<compile_context>
chip_gen: v6e
topology: v6e:2x2x1
jax: 0.10.0
libtpu: 0.0.40
codegen_flags: <defaults>
</compile_context>

<pallas_src>
import functools

import jax
import jax.numpy as jnp
from jax.experimental import pallas as pl
from jax.experimental.pallas import tpu as pltpu

H1 = 200    # linear1: 1 -> 200   (logical)
H1P = 256   # padded hidden-1 width (clean multiple of MXU tile / 128 lanes)
H2 = 800    # linear2: 200 -> 800
H3 = 1      # linear3: 800 -> 1


def mlp_kernel(x_ref, w1_ref, b1_ref, w2_ref, b2_ref, w3_ref, b3_ref, o_ref):
    # x_ref : (tm, 1)  f32
    # w1_ref: (1, H1P) f32, b1_ref: (1, H1P) f32   (columns 200..255 are zero)
    # w2_ref: (H1P, H2) bf16                        (rows 200..255 are zero)
    # b2_ref: (1, H2)  f32
    # w3_ref: (1, H2)  f32  (linear3 weight stored as a row)
    # b3_ref: (1, 1)   f32
    x = x_ref[...]                                               # (tm, 1)

    # ----- layer 1: outer product == broadcast multiply (VPU, no MXU) -----
    h1 = jnp.maximum(x * w1_ref[...] + b1_ref[...], 0.0)         # (tm, H1P) f32

    # ----- layer 2: the single real matmul (MXU, bf16 in / f32 accumulate) -----
    h2 = jnp.dot(h1.astype(jnp.bfloat16), w2_ref[...],
                 preferred_element_type=jnp.float32) + b2_ref[...]
    h2 = jnp.maximum(h2, 0.0)                                    # (tm, H2) f32

    # ----- layer 3: multiply (VPU) + lane reduction (XLU) instead of N=1 matmul -----
    y = jnp.sum(h2 * w3_ref[...], axis=-1, keepdims=True) + b3_ref[...]   # (tm, 1)
    o_ref[...] = y.astype(o_ref.dtype)


@functools.partial(jax.jit, static_argnames=("tm",))
def mlp_forward(x, w1p, b1p, w2p, b2, w3r, b3, *, tm=256):
    n = x.shape[0]
    n_pad = pl.cdiv(n, tm) * tm
    if n_pad != n:                       # ragged batch -> zero-pad rows (sliced off below)
        x = jnp.pad(x, ((0, n_pad - n), (0, 0)))

    grid = (n_pad // tm,)
    full = lambda i: (0, 0)              # weights resident: same block every grid step

    out = pl.pallas_call(
        mlp_kernel,
        out_shape=jax.ShapeDtypeStruct((n_pad, H3), jnp.float32),
        grid_spec=pl.GridSpec(
            grid=grid,
            in_specs=[
                pl.BlockSpec((tm, 1), lambda i: (i, 0)),   # x tile (double-buffered stream)
                pl.BlockSpec((1, H1P), full),              # W1 (padded, row layout)
                pl.BlockSpec((1, H1P), full),              # b1 (padded)
                pl.BlockSpec((H1P, H2), full),             # W2 (padded rows, bf16)
                pl.BlockSpec((1, H2), full),               # b2
                pl.BlockSpec((1, H2), full),               # W3 as a row
                pl.BlockSpec((1, 1), full),                # b3
            ],
            out_specs=pl.BlockSpec((tm, H3), lambda i: (i, 0)),
        ),
        compiler_params=pltpu.CompilerParams(
            # batch axis is independent -> megacore sharding on v7x's 2 TensorCores
            dimension_semantics=("parallel",),
        ),
    )(x, w1p, b1p, w2p, b2, w3r, b3)
    return out[:n]


def init_params(key):
    """torch.nn.Linear default init: U[-1/sqrt(fan_in), 1/sqrt(fan_in)], stored transposed."""
    ks = jax.random.split(key, 6)

    def uniform(k, shape, fan_in):
        bound = 1.0 / jnp.sqrt(jnp.asarray(fan_in, jnp.float32))
        return jax.random.uniform(k, shape, jnp.float32, -bound, bound)

    w1 = uniform(ks[0], (1, H1), 1)        # (in, out)
    b1 = uniform(ks[1], (1, H1), 1)
    w2 = uniform(ks[2], (H1, H2), H1)
    b2 = uniform(ks[3], (1, H2), H1)
    w3 = uniform(ks[4], (1, H2), H2)       # linear3 weight stored as a row (1, 800)
    b3 = uniform(ks[5], (1, H3), H2)
    return w1, b1, w2, b2, w3, b3


def prepare_params(params):
    """Zero-pad hidden-1 (200 -> 256) and cast the dominant matmul weight to bf16."""
    w1, b1, w2, b2, w3, b3 = params
    pad = H1P - H1
    w1p = jnp.pad(w1, ((0, 0), (0, pad)))                       # (1, 256)  f32
    b1p = jnp.pad(b1, ((0, 0), (0, pad)))                       # (1, 256)  f32
    w2p = jnp.pad(w2, ((0, pad), (0, 0))).astype(jnp.bfloat16)  # (256, 800) bf16
    return w1p, b1p, w2p, b2, w3, b3


def reference_forward_bf16(x, w1, b1, w2, b2, w3, b3):
    """Same math as the kernel (bf16 layer-2 operands, f32 accumulate)."""
    h1 = jnp.maximum(x * w1 + b1, 0.0)
    h2 = jnp.dot(h1.astype(jnp.bfloat16), w2.astype(jnp.bfloat16),
                 preferred_element_type=jnp.float32) + b2
    h2 = jnp.maximum(h2, 0.0)
    return jnp.sum(h2 * w3, axis=-1, keepdims=True) + b3


def reference_forward_f32(x, w1, b1, w2, b2, w3, b3):
    """Full-precision reference of the original PyTorch forward."""
    h1 = jnp.maximum(x @ w1 + b1, 0.0)
    h2 = jnp.maximum(h1 @ w2 + b2, 0.0)
    return h2 @ w3.T + b3


# TODO(synk): MSELoss / SGD optimizer in the module are training-time state, not part of
# the forward pass, and are intentionally not implemented.

if __name__ == "__main__":
    key = jax.random.PRNGKey(0)
    pkey, xkey = jax.random.split(key)
    params = init_params(pkey)
    kparams = prepare_params(params)

    # batch of scalar inputs (ragged w.r.t. tm=256 -> exercises padding + 2 grid steps)
    n = 300
    x = jax.random.normal(xkey, (n, 1), jnp.float32)

    out = mlp_forward(x, *kparams, tm=256)
    out = jax.block_until_ready(out)
    assert out.shape == (n, H3)

    # tight check vs a reference doing the exact same bf16 layer-2 math
    ref_bf16 = reference_forward_bf16(x, *params)
    assert jnp.allclose(out, ref_bf16, atol=1e-3, rtol=1e-3), "mismatch vs bf16 reference"

    # loose check vs the full-f32 PyTorch-equivalent forward (bf16 quantization error bound)
    ref_f32 = reference_forward_f32(x, *params)
    assert jnp.allclose(out, ref_f32, atol=5e-2, rtol=5e-2), "mismatch vs f32 reference"

    print("KERNEL_OK")
</pallas_src>

<mosaic_0001>
module attributes {stable_mosaic.version = 11 : i64} {
  func.func @mlp_kernel(%arg0: i32, %arg1: memref<256x1xf32, #tpu.memory_space<vmem>>, %arg2: memref<1x256xf32, #tpu.memory_space<vmem>>, %arg3: memref<1x256xf32, #tpu.memory_space<vmem>>, %arg4: memref<256x800xbf16, #tpu.memory_space<vmem>>, %arg5: memref<1x800xf32, #tpu.memory_space<vmem>>, %arg6: memref<1x800xf32, #tpu.memory_space<vmem>>, %arg7: memref<1x1xf32, #tpu.memory_space<vmem>>, %arg8: memref<256x1xf32, #tpu.memory_space<vmem>>) attributes {dimension_semantics = [#tpu.dimension_semantics<parallel>], iteration_bounds = array<i64: 2>, scalar_prefetch = 0 : i64, scratch_operands = 0 : i64, tpu.core_type = #tpu.core_type<tc>, window_params = [{transform_indices = @transform_0, window_bounds = array<i64: 256, 1>}, {pipeline_mode = #tpu.pipeline_mode<synchronous>, transform_indices = @transform_1, window_bounds = array<i64: 1, 256>}, {pipeline_mode = #tpu.pipeline_mode<synchronous>, transform_indices = @transform_2, window_bounds = array<i64: 1, 256>}, {pipeline_mode = #tpu.pipeline_mode<synchronous>, transform_indices = @transform_3, window_bounds = array<i64: 256, 800>}, {pipeline_mode = #tpu.pipeline_mode<synchronous>, transform_indices = @transform_4, window_bounds = array<i64: 1, 800>}, {pipeline_mode = #tpu.pipeline_mode<synchronous>, transform_indices = @transform_5, window_bounds = array<i64: 1, 800>}, {pipeline_mode = #tpu.pipeline_mode<synchronous>, transform_indices = @transform_6, window_bounds = array<i64: 1, 1>}, {transform_indices = @transform_7, window_bounds = array<i64: 256, 1>}]} {
    %c0 = arith.constant 0 : index
    %c0_0 = arith.constant 0 : index
    %0 = vector.load %arg1[%c0, %c0_0] : memref<256x1xf32, #tpu.memory_space<vmem>>, vector<256x1xf32>
    %c0_1 = arith.constant 0 : index
    %c0_2 = arith.constant 0 : index
    %1 = vector.load %arg2[%c0_1, %c0_2] : memref<1x256xf32, #tpu.memory_space<vmem>>, vector<1x256xf32>
    %2 = vector.broadcast %0 : vector<256x1xf32> to vector<256x256xf32>
    %3 = vector.broadcast %1 : vector<1x256xf32> to vector<256x256xf32>
    %4 = arith.mulf %2, %3 : vector<256x256xf32>
    %c0_3 = arith.constant 0 : index
    %c0_4 = arith.constant 0 : index
    %5 = vector.load %arg3[%c0_3, %c0_4] : memref<1x256xf32, #tpu.memory_space<vmem>>, vector<1x256xf32>
    %6 = vector.broadcast %5 : vector<1x256xf32> to vector<256x256xf32>
    %7 = arith.addf %4, %6 : vector<256x256xf32>
    %cst = arith.constant 0.000000e+00 : f32
    %8 = vector.broadcast %cst : f32 to vector<256x256xf32>
    %9 = arith.maximumf %7, %8 : vector<256x256xf32>
    %10 = arith.truncf %9 : vector<256x256xf32> to vector<256x256xbf16>
    %c0_5 = arith.constant 0 : index
    %c0_6 = arith.constant 0 : index
    %11 = vector.load %arg4[%c0_5, %c0_6] : memref<256x800xbf16, #tpu.memory_space<vmem>>, vector<256x800xbf16>
    %cst_7 = arith.constant dense<0.000000e+00> : vector<256x800xf32>
    %12 = tpu.matmul %10, %11, %cst_7 {dimension_numbers = #tpu.dot_dimension_numbers<[1], [0], [0], [1], [0, 0, 1, 1], [], []>} : vector<256x256xbf16>, vector<256x800xbf16>, vector<256x800xf32> -> vector<256x800xf32>
    %c0_8 = arith.constant 0 : index
    %c0_9 = arith.constant 0 : index
    %13 = vector.load %arg5[%c0_8, %c0_9] : memref<1x800xf32, #tpu.memory_space<vmem>>, vector<1x800xf32>
    %14 = vector.broadcast %13 : vector<1x800xf32> to vector<256x800xf32>
    %15 = arith.addf %12, %14 : vector<256x800xf32>
    %cst_10 = arith.constant 0.000000e+00 : f32
    %16 = vector.broadcast %cst_10 : f32 to vector<256x800xf32>
    %17 = arith.maximumf %15, %16 : vector<256x800xf32>
    %c0_11 = arith.constant 0 : index
    %c0_12 = arith.constant 0 : index
    %18 = vector.load %arg6[%c0_11, %c0_12] : memref<1x800xf32, #tpu.memory_space<vmem>>, vector<1x800xf32>
    %19 = vector.broadcast %18 : vector<1x800xf32> to vector<256x800xf32>
    %20 = arith.mulf %17, %19 : vector<256x800xf32>
    %cst_13 = arith.constant dense<0.000000e+00> : vector<256xf32>
    %21 = vector.multi_reduction <add>, %20, %cst_13 [1] : vector<256x800xf32> to vector<256xf32>
    %22 = vector.shape_cast %21 : vector<256xf32> to vector<256x1xf32>
    %c0_14 = arith.constant 0 : index
    %c0_15 = arith.constant 0 : index
    %23 = vector.load %arg7[%c0_14, %c0_15] : memref<1x1xf32, #tpu.memory_space<vmem>>, vector<1x1xf32>
    %24 = vector.broadcast %23 : vector<1x1xf32> to vector<256x1xf32>
    %25 = arith.addf %22, %24 : vector<256x1xf32>
    %c0_16 = arith.constant 0 : index
    %c0_17 = arith.constant 0 : index
    %26 = vector.load %arg8[%c0_16, %c0_17] : memref<256x1xf32, #tpu.memory_space<vmem>>, vector<256x1xf32>
    tpu.vector_store %arg8[%c0_16, %c0_17], %25 {strides = array<i32>} : memref<256x1xf32, #tpu.memory_space<vmem>>, vector<256x1xf32>,
    return
  }
  func.func @transform_0(%arg0: i32) -> (i32, i32) {
    %c0_i32 = arith.constant 0 : i32
    %c0_i32_0 = arith.constant 0 : i32
    return %arg0, %c0_i32 : i32, i32
  }
  func.func @transform_1(%arg0: i32) -> (i32, i32) {
    %c0_i32 = arith.constant 0 : i32
    %c0_i32_0 = arith.constant 0 : i32
    %c0_i32_1 = arith.constant 0 : i32
    return %c0_i32, %c0_i32_0 : i32, i32
  }
  func.func @transform_2(%arg0: i32) -> (i32, i32) {
    %c0_i32 = arith.constant 0 : i32
    %c0_i32_0 = arith.constant 0 : i32
    %c0_i32_1 = arith.constant 0 : i32
    return %c0_i32, %c0_i32_0 : i32, i32
  }
  func.func @transform_3(%arg0: i32) -> (i32, i32) {
    %c0_i32 = arith.constant 0 : i32
    %c0_i32_0 = arith.constant 0 : i32
    %c0_i32_1 = arith.constant 0 : i32
    return %c0_i32, %c0_i32_0 : i32, i32
  }
  func.func @transform_4(%arg0: i32) -> (i32, i32) {
    %c0_i32 = arith.constant 0 : i32
    %c0_i32_0 = arith.constant 0 : i32
    %c0_i32_1 = arith.constant 0 : i32
    return %c0_i32, %c0_i32_0 : i32, i32
  }
  func.func @transform_5(%arg0: i32) -> (i32, i32) {
    %c0_i32 = arith.constant 0 : i32
    %c0_i32_0 = arith.constant 0 : i32
    %c0_i32_1 = arith.constant 0 : i32
    return %c0_i32, %c0_i32_0 : i32, i32
  }
  func.func @transform_6(%arg0: i32) -> (i32, i32) {
    %c0_i32 = arith.constant 0 : i32
    %c0_i32_0 = arith.constant 0 : i32
    %c0_i32_1 = arith.constant 0 : i32
    return %c0_i32, %c0_i32_0 : i32, i32
  }
  func.func @transform_7(%arg0: i32) -> (i32, i32) {
    %c0_i32 = arith.constant 0 : i32
    %c0_i32_0 = arith.constant 0 : i32
    return %arg0, %c0_i32 : i32, i32
  }
}

</mosaic_0001>

<llo_original>
// kernel: mlp_forward.1
$region0: #{mlp_forward.1}
  #allocation0 [shape = 'u32[]', space=smem, size = 0x4, offset = 0x4, fixed_abs, tag = 'smem constant byte address 0x4 - core index']
  #allocation1 [shape = 'u32[144,128]{1,0:T(1,128)}', space=vmem, size = 0x12000, scoped, tag = 'internal scratch']
  #allocation2 [shape = 'f32[1,1]{1,0:T(1,128)S(1)}', space=vmem, size = 0x200, scoped, tag = 'scoped memory for mlp_forward.1']
  %s0 = inlined_call_operand.vmem [shape: f32[512,1], index: 0, kind: input, shape index: {}]
  %s1 = inlined_call_operand.vmem [shape: f32[1,256], index: 1, kind: input, shape index: {}]
  %s2 = inlined_call_operand.vmem [shape: f32[1,256], index: 2, kind: input, shape index: {}]
  %s3 = inlined_call_operand.vmem [shape: bf16[256,800], index: 3, kind: input, shape index: {}]
  %s4 = inlined_call_operand.vmem [shape: f32[1,800], index: 4, kind: input, shape index: {}]
  %s5 = inlined_call_operand.vmem [shape: f32[1,800], index: 5, kind: input, shape index: {}]
  %s6 = inlined_call_operand.<no memory space> [shape: f32[1,1], index: 6, kind: input, shape index: {}]
  %s7 = inlined_call_operand.vmem [shape: f32[512,1], index: 7, kind: output, shape index: {}]
  %s8 = sld [smem:[#allocation0]]
  $region61: #{mlp_forward.1} parent=0
    _
  %s10 = ssub.s32 1, %s8
  %s11 = scalar_select 0, %s10, %s8
  %v12 = vstv %s6
  %13 = vst [vmem:[#allocation2] sm:$0x1] %v12
  loop: start=0, step=1, limit=4
  $region2: #{mlp_forward.1} parent=0 // loop_pre_header
    _
  $region3: #{mlp_forward.1} parent=0 // loop_header
    %s15 = sphi 0, %s19
    %p16 = scmp.ge.s32.totalorder %s15, 4
    %s25 = sphi 0, %s27
    %s28 = sphi 0, %s25
    %s29 = sphi 0, %s28
    %s45 = sphi 0, %s29
    %s49 = sphi 0, %s49
    %s51 = sphi 0, %s49
    %s52 = sphi 0, %s51
    %s66 = sphi 0, %s52
    %s70 = sphi 0, %s70
    %s72 = sphi 0, %s70
    %s73 = sphi 0, %s72
    %s87 = sphi 0, %s73
    %s91 = sphi 0, %s91
    %s93 = sphi 0, %s91
    %s94 = sphi 0, %s93
    %s108 = sphi 0, %s94
    %s112 = sphi 0, %s112
    %s114 = sphi 0, %s112
    %s115 = sphi 0, %s114
    %s129 = sphi 0, %s115
    %s133 = sphi 0, %s133
    %s135 = sphi 0, %s133
    %s136 = sphi 0, %s135
    %s150 = sphi 0, %s136
    %s154 = sphi 0, %s154
    %s156 = sphi 0, %s154
    %s157 = sphi 0, %s156
    %s171 = sphi 0, %s157
    %s177 = sphi 0, %s179
    %s180 = sphi 0, %s177
    %s181 = sphi 0, %s180
    %s197 = sphi 0, %s181
  $region4: #{mlp_forward.1} parent=0 // loop_header_branch
    %18 = sbr.rel (%p16) target = $region8
  $region5: #{mlp_forward.1} parent=0 // loop_body
    %s20 = ssub.s32 %s15, 1
    %s21 = ssub.s32 %s15, 2
    %s22 = sadd.s32 %s15, 1
    %s23 = ssub.s32 %s15, %s22
    %p24 = scmp.eq.s32.totalorder %s23, 0
    %s26 = sadd.s32 %s25, 1
    %s27 = scalar_select %p24, %s25, %s26
    %p30 = pneg %p24
    %p31 = scmp.eq.s32.totalorder %s15, 1
    %p32 = por %p30, %p31
    %p33 = scmp.ne.s32.totalorder %s25, %s28
    %p34 = scmp.eq.s32.totalorder %s15, 0
    %p35 = por %p33, %p34
    %p36 = scmp.ne.s32.totalorder %s25, %s28
    %p37 = scmp.eq.s32.totalorder %s20, 1
    %p38 = por %p36, %p37
    %p39 = scmp.ne.s32.totalorder %s28, %s29
    %p40 = scmp.eq.s32.totalorder %s20, 0
    %p41 = por %p39, %p40
    %p42 = scmp.ne.s32.totalorder %s28, %s29
    %p43 = scmp.eq.s32.totalorder %s21, 1
    %p44 = por %p42, %p43
    %p46 = scmp.ne.s32.totalorder %s29, %s45
    %p47 = scmp.eq.s32.totalorder %s21, 0
    %p48 = por %p46, %p47
    %s50 = sadd.s32 %s49, 1
    %p53 = scmp.eq.s32.totalorder %s15, 1
    %p54 = scmp.ne.s32.totalorder %s49, %s51
    %p55 = scmp.eq.s32.totalorder %s15, 0
    %p56 = por %p54, %p55
    %p57 = scmp.ne.s32.totalorder %s49, %s51
    %p58 = scmp.eq.s32.totalorder %s20, 1
    %p59 = por %p57, %p58
    %p60 = scmp.ne.s32.totalorder %s51, %s52
    %p61 = scmp.eq.s32.totalorder %s20, 0
    %p62 = por %p60, %p61
    %p63 = scmp.ne.s32.totalorder %s51, %s52
    %p64 = scmp.eq.s32.totalorder %s21, 1
    %p65 = por %p63, %p64
    %p67 = scmp.ne.s32.totalorder %s52, %s66
    %p68 = scmp.eq.s32.totalorder %s21, 0
    %p69 = por %p67, %p68
    %s71 = sadd.s32 %s70, 1
    %p74 = scmp.eq.s32.totalorder %s15, 1
    %p75 = scmp.ne.s32.totalorder %s70, %s72
    %p76 = scmp.eq.s32.totalorder %s15, 0
    %p77 = por %p75, %p76
    %p78 = scmp.ne.s32.totalorder %s70, %s72
    %p79 = scmp.eq.s32.totalorder %s20, 1
    %p80 = por %p78, %p79
    %p81 = scmp.ne.s32.totalorder %s72, %s73
    %p82 = scmp.eq.s32.totalorder %s20, 0
    %p83 = por %p81, %p82
    %p84 = scmp.ne.s32.totalorder %s72, %s73
    %p85 = scmp.eq.s32.totalorder %s21, 1
    %p86 = por %p84, %p85
    %p88 = scmp.ne.s32.totalorder %s73, %s87
    %p89 = scmp.eq.s32.totalorder %s21, 0
    %p90 = por %p88, %p89
    %s92 = sadd.s32 %s91, 1
    %p95 = scmp.eq.s32.totalorder %s15, 1
    %p96 = scmp.ne.s32.totalorder %s91, %s93
    %p97 = scmp.eq.s32.totalorder %s15, 0
    %p98 = por %p96, %p97
    %p99 = scmp.ne.s32.totalorder %s91, %s93
    %p100 = scmp.eq.s32.totalorder %s20, 1
    %p101 = por %p99, %p100
    %p102 = scmp.ne.s32.totalorder %s93, %s94
    %p103 = scmp.eq.s32.totalorder %s20, 0
    %p104 = por %p102, %p103
    %p105 = scmp.ne.s32.totalorder %s93, %s94
    %p106 = scmp.eq.s32.totalorder %s21, 1
    %p107 = por %p105, %p106
    %p109 = scmp.ne.s32.totalorder %s94, %s108
    %p110 = scmp.eq.s32.totalorder %s21, 0
    %p111 = por %p109, %p110
    %s113 = sadd.s32 %s112, 1
    %p116 = scmp.eq.s32.totalorder %s15, 1
    %p117 = scmp.ne.s32.totalorder %s112, %s114
    %p118 = scmp.eq.s32.totalorder %s15, 0
    %p119 = por %p117, %p118
    %p120 = scmp.ne.s32.totalorder %s112, %s114
    %p121 = scmp.eq.s32.totalorder %s20, 1
    %p122 = por %p120, %p121
    %p123 = scmp.ne.s32.totalorder %s114, %s115
    %p124 = scmp.eq.s32.totalorder %s20, 0
    %p125 = por %p123, %p124
    %p126 = scmp.ne.s32.totalorder %s114, %s115
    %p127 = scmp.eq.s32.totalorder %s21, 1
    %p128 = por %p126, %p127
    %p130 = scmp.ne.s32.totalorder %s115, %s129
    %p131 = scmp.eq.s32.totalorder %s21, 0
    %p132 = por %p130, %p131
    %s134 = sadd.s32 %s133, 1
    %p137 = scmp.eq.s32.totalorder %s15, 1
    %p138 = scmp.ne.s32.totalorder %s133, %s135
    %p139 = scmp.eq.s32.totalorder %s15, 0
    %p140 = por %p138, %p139
    %p141 = scmp.ne.s32.totalorder %s133, %s135
    %p142 = scmp.eq.s32.totalorder %s20, 1
    %p143 = por %p141, %p142
    %p144 = scmp.ne.s32.totalorder %s135, %s136
    %p145 = scmp.eq.s32.totalorder %s20, 0
    %p146 = por %p144, %p145
    %p147 = scmp.ne.s32.totalorder %s135, %s136
    %p148 = scmp.eq.s32.totalorder %s21, 1
    %p149 = por %p147, %p148
    %p151 = scmp.ne.s32.totalorder %s136, %s150
    %p152 = scmp.eq.s32.totalorder %s21, 0
    %p153 = por %p151, %p152
    %s155 = sadd.s32 %s154, 1
    %p158 = scmp.eq.s32.totalorder %s15, 1
    %p159 = scmp.ne.s32.totalorder %s154, %s156
    %p160 = scmp.eq.s32.totalorder %s15, 0
    %p161 = por %p159, %p160
    %p162 = scmp.ne.s32.totalorder %s154, %s156
    %p163 = scmp.eq.s32.totalorder %s20, 1
    %p164 = por %p162, %p163
    %p165 = scmp.ne.s32.totalorder %s156, %s157
    %p166 = scmp.eq.s32.totalorder %s20, 0
    %p167 = por %p165, %p166
    %p168 = scmp.ne.s32.totalorder %s156, %s157
    %p169 = scmp.eq.s32.totalorder %s21, 1
    %p170 = por %p168, %p169
    %p172 = scmp.ne.s32.totalorder %s157, %s171
    %p173 = scmp.eq.s32.totalorder %s21, 0
    %p174 = por %p172, %p173
    %s175 = ssub.s32 %s15, %s22
    %p176 = scmp.eq.s32.totalorder %s175, 0
    %s178 = sadd.s32 %s177, 1
    %s179 = scalar_select %p176, %s177, %s178
    %p182 = pneg %p176
    %p183 = scmp.eq.s32.totalorder %s15, 1
    %p184 = por %p182, %p183
    %p185 = scmp.ne.s32.totalorder %s177, %s180
    %p186 = scmp.eq.s32.totalorder %s15, 0
    %p187 = por %p185, %p186
    %p188 = scmp.ne.s32.totalorder %s177, %s180
    %p189 = scmp.eq.s32.totalorder %s20, 1
    %p190 = por %p188, %p189
    %p191 = scmp.ne.s32.totalorder %s180, %s181
    %p192 = scmp.eq.s32.totalorder %s20, 0
    %p193 = por %p191, %p192
    %p194 = scmp.ne.s32.totalorder %s180, %s181
    %p195 = scmp.eq.s32.totalorder %s21, 1
    %p196 = por %p194, %p195
    %p198 = scmp.ne.s32.totalorder %s181, %s197
    %p199 = scmp.eq.s32.totalorder %s21, 0
    %p200 = por %p198, %p199
    %p201 = scmp.le.s32.totalorder 1, %s15
    %p202 = scmp.lt.s32.totalorder %s15, 3
    %p203 = pnand %p201, %p202
    %p204 = pneg %p203
    // Predicated region
    $region9: #{mlp_forward.1} parent=5 // pred_check
      _
    $region10: #{mlp_forward.1} parent=5 // pred_check_branch
      %206 = sbr.rel (%p203) target = $region12
    $region11: #{mlp_forward.1} parent=5 // pred_region
      %s207 = ssub.s32 %s15, 1
      // Predicated region
      $region13: #{mlp_forward.1} parent=11 // pred_check
        %p208 = pneg %p62
      $region14: #{mlp_forward.1} parent=11 // pred_check_branch
        %210 = sbr.rel (%p208) target = $region16
      $region15: #{mlp_forward.1} parent=11 // pred_region
        _
      $region16: #{mlp_forward.1} parent=11 // pred_fallthru
        _
      // Predicated region
      $region17: #{mlp_forward.1} parent=11 // pred_check
        %p211 = pneg %p83
      $region18: #{mlp_forward.1} parent=11 // pred_check_branch
        %213 = sbr.rel (%p211) target = $region20
      $region19: #{mlp_forward.1} parent=11 // pred_region
        _
      $region20: #{mlp_forward.1} parent=11 // pred_fallthru
        _
      // Predicated region
      $region21: #{mlp_forward.1} parent=11 // pred_check
        %p214 = pneg %p104
      $region22: #{mlp_forward.1} parent=11 // pred_check_branch
        %216 = sbr.rel (%p214) target = $region24
      $region23: #{mlp_forward.1} parent=11 // pred_region
        _
      $region24: #{mlp_forward.1} parent=11 // pred_fallthru
        _
      // Predicated region
      $region25: #{mlp_forward.1} parent=11 // pred_check
        %p217 = pneg %p125
      $region26: #{mlp_forward.1} parent=11 // pred_check_branch
        %219 = sbr.rel (%p217) target = $region28
      $region27: #{mlp_forward.1} parent=11 // pred_region
        _
      $region28: #{mlp_forward.1} parent=11 // pred_fallthru
        _
      // Predicated region
      $region29: #{mlp_forward.1} parent=11 // pred_check
        %p220 = pneg %p146
      $region30: #{mlp_forward.1} parent=11 // pred_check_branch
        %222 = sbr.rel (%p220) target = $region32
      $region31: #{mlp_forward.1} parent=11 // pred_region
        _
      $region32: #{mlp_forward.1} parent=11 // pred_fallthru
        _
      // Predicated region
      $region33: #{mlp_forward.1} parent=11 // pred_check
        %p223 = pneg %p167
      $region34: #{mlp_forward.1} parent=11 // pred_check_branch
        %225 = sbr.rel (%p223) target = $region36
      $region35: #{mlp_forward.1} parent=11 // pred_region
        _
      $region36: #{mlp_forward.1} parent=11 // pred_fallthru
        _
    $region12: #{mlp_forward.1} parent=5 // pred_fallthru
      _
    %p226 = scmp.lt.s32.totalorder %s15, 2
    // Predicated region
    $region37: #{mlp_forward.1} parent=5 // pred_check
      %p227 = pneg %p226
    $region38: #{mlp_forward.1} parent=5 // pred_check_branch
      %229 = sbr.rel (%p227) target = $region40
    $region39: #{mlp_forward.1} parent=5 // pred_region
      // Predicated region
      $region41: #{mlp_forward.1} parent=39 // pred_check
        %p230 = pneg %p35
      $region42: #{mlp_forward.1} parent=39 // pred_check_branch
        %232 = sbr.rel (%p230) target = $region44
      $region43: #{mlp_forward.1} parent=39 // pred_region
        %s233 = smul.u32 32, %s15
        %p234 = scmp.lt.s32.totalorder %s233, 63
        %s235 = scalar_select %p234, %s233, 63
        %s236 = smul.addr %s235, 8
        %s237 = scalar_lea.vmem %s0, %s236
        %s238 = smul.u32 32, %s15
      $region44: #{mlp_forward.1} parent=39 // pred_fallthru
        _
    $region40: #{mlp_forward.1} parent=5 // pred_fallthru
      _
    %p239 = scmp.le.s32.totalorder 1, %s15
    %p240 = scmp.lt.s32.totalorder %s15, 3
    %p241 = pnand %p239, %p240
    %p242 = pneg %p241
    // Predicated region
    $region45: #{mlp_forward.1} parent=5 // pred_check
      _
    $region46: #{mlp_forward.1} parent=5 // pred_check_branch
      %244 = sbr.rel (%p241) target = $region48
    $region47: #{mlp_forward.1} parent=5 // pred_region
      %s245 = ssub.s32 %s15, 1
      %s246 = smul.u32 32, %s20
      %p247 = scmp.lt.s32.totalorder %s246, 63
      %s248 = scalar_select %p247, %s246, 63
      %s249 = smul.addr %s248, 8
      %s250 = scalar_lea.vmem %s0, %s249
      %p251 = pneg %p41
      %p252 = pneg %p38
      %p253 = pneg %p62
      %p254 = pneg %p59
      %p255 = pneg %p83
      %p256 = pneg %p80
      %p257 = pneg %p104
      %p258 = pneg %p101
      %p259 = pneg %p125
      %p260 = pneg %p122
      %p261 = pneg %p146
      %p262 = pneg %p143
      %p263 = pneg %p167
      %p264 = pneg %p164
      %p265 = pneg %p193
      %p266 = pneg %p190
      %s267 = smul.u32 32, %s20
      %p268 = scmp.lt.s32.totalorder %s267, 63
      %s269 = scalar_select %p268, %s267, 63
      %s270 = smul.addr %s269, 8
      %s271 = scalar_lea.vmem %s7, %s270
      %s272 = smul.u32 32, %s20
      %p273 = scmp.lt.s32.totalorder %s272, 63
      %s274 = scalar_select %p273, %s272, 63
      %s275 = smul.addr %s274, 8
      %s276 = scalar_lea.vmem %s0, %s275
      %s277 = smul.u32 32, %s20
      %s278 = smul.u32 32, %s20
      %p279 = scmp.lt.s32.totalorder %s278, 63
      %s280 = scalar_select %p279, %s278, 63
      %s281 = smul.addr %s280, 8
      %s282 = scalar_lea.vmem %s7, %s281
      %s283 = smul.u32 32, %s20
      %v285 = vld [vmem:[%s276] sm:$0xff]
      %v286 = vld [vmem:[%s276 + $0x8] sm:$0xff]
      %v287 = vld [vmem:[%s276 + $0x10] sm:$0xff]
      %v288 = vld [vmem:[%s276 + $0x18] sm:$0xff]
      %v289 = vld [vmem:[%s276 + $0x20] sm:$0xff]
      %v290 = vld [vmem:[%s276 + $0x28] sm:$0xff]
      %v291 = vld [vmem:[%s276 + $0x30] sm:$0xff]
      %v292 = vld [vmem:[%s276 + $0x38] sm:$0xff]
      %v293 = vld [vmem:[%s276 + $0x40] sm:$0xff]
      %v294 = vld [vmem:[%s276 + $0x48] sm:$0xff]
      %v295 = vld [vmem:[%s276 + $0x50] sm:$0xff]
      %v296 = vld [vmem:[%s276 + $0x58] sm:$0xff]
      %v297 = vld [vmem:[%s276 + $0x60] sm:$0xff]
      %v298 = vld [vmem:[%s276 + $0x68] sm:$0xff]
      %v299 = vld [vmem:[%s276 + $0x70] sm:$0xff]
      %v300 = vld [vmem:[%s276 + $0x78] sm:$0xff]
      %v301 = vld [vmem:[%s276 + $0x80] sm:$0xff]
      %v302 = vld [vmem:[%s276 + $0x88] sm:$0xff]
      %v303 = vld [vmem:[%s276 + $0x90] sm:$0xff]
      %v304 = vld [vmem:[%s276 + $0x98] sm:$0xff]
      %v305 = vld [vmem:[%s276 + $0xa0] sm:$0xff]
      %v306 = vld [vmem:[%s276 + $0xa8] sm:$0xff]
      %v307 = vld [vmem:[%s276 + $0xb0] sm:$0xff]
      %v308 = vld [vmem:[%s276 + $0xb8] sm:$0xff]
      %v309 = vld [vmem:[%s276 + $0xc0] sm:$0xff]
      %v310 = vld [vmem:[%s276 + $0xc8] sm:$0xff]
      %v311 = vld [vmem:[%s276 + $0xd0] sm:$0xff]
      %v312 = vld [vmem:[%s276 + $0xd8] sm:$0xff]
      %v313 = vld [vmem:[%s276 + $0xe0] sm:$0xff]
      %v314 = vld [vmem:[%s276 + $0xe8] sm:$0xff]
      %v315 = vld [vmem:[%s276 + $0xf0] sm:$0xff]
      %v316 = vld [vmem:[%s276 + $0xf8] sm:$0xff]
      %v317 = vld [vmem:[%s1] sm:$0x3]
      %319 = vset.pattern.permute.xlu0 0
      %320 = vperm.xlu0 %319, %v285
      %v321 = vpop.permute.xlu0 %320
      %324 = vset.pattern.permute.xlu0 0
      %325 = vperm.xlu0 %324, %v286
      %v326 = vpop.permute.xlu0 %325
      %329 = vset.pattern.permute.xlu0 0
      %330 = vperm.xlu0 %329, %v287
      %v331 = vpop.permute.xlu0 %330
      %334 = vset.pattern.permute.xlu0 0
      %335 = vperm.xlu0 %334, %v288
      %v336 = vpop.permute.xlu0 %335
      %339 = vset.pattern.permute.xlu0 0
      %340 = vperm.xlu0 %339, %v289
      %v341 = vpop.permute.xlu0 %340
      %344 = vset.pattern.permute.xlu0 0
      %345 = vperm.xlu0 %344, %v290
      %v346 = vpop.permute.xlu0 %345
      %349 = vset.pattern.permute.xlu0 0
      %350 = vperm.xlu0 %349, %v291
      %v351 = vpop.permute.xlu0 %350
      %354 = vset.pattern.permute.xlu0 0
      %355 = vperm.xlu0 %354, %v292
      %v356 = vpop.permute.xlu0 %355
      %359 = vset.pattern.permute.xlu0 0
      %360 = vperm.xlu0 %359, %v293
      %v361 = vpop.permute.xlu0 %360
      %364 = vset.pattern.permute.xlu0 0
      %365 = vperm.xlu0 %364, %v294
      %v366 = vpop.permute.xlu0 %365
      %369 = vset.pattern.permute.xlu0 0
      %370 = vperm.xlu0 %369, %v295
      %v371 = vpop.permute.xlu0 %370
      %374 = vset.pattern.permute.xlu0 0
      %375 = vperm.xlu0 %374, %v296
      %v376 = vpop.permute.xlu0 %375
      %379 = vset.pattern.permute.xlu0 0
      %380 = vperm.xlu0 %379, %v297
      %v381 = vpop.permute.xlu0 %380
      %384 = vset.pattern.permute.xlu0 0
      %385 = vperm.xlu0 %384, %v298
      %v386 = vpop.permute.xlu0 %385
      %389 = vset.pattern.permute.xlu0 0
      %390 = vperm.xlu0 %389, %v299
      %v391 = vpop.permute.xlu0 %390
      %394 = vset.pattern.permute.xlu0 0
      %395 = vperm.xlu0 %394, %v300
      %v396 = vpop.permute.xlu0 %395
      %399 = vset.pattern.permute.xlu0 0
      %400 = vperm.xlu0 %399, %v301
      %v401 = vpop.permute.xlu0 %400
      %404 = vset.pattern.permute.xlu0 0
      %405 = vperm.xlu0 %404, %v302
      %v406 = vpop.permute.xlu0 %405
      %409 = vset.pattern.permute.xlu0 0
      %410 = vperm.xlu0 %409, %v303
      %v411 = vpop.permute.xlu0 %410
      %414 = vset.pattern.permute.xlu0 0
      %415 = vperm.xlu0 %414, %v304
      %v416 = vpop.permute.xlu0 %415
      %419 = vset.pattern.permute.xlu0 0
      %420 = vperm.xlu0 %419, %v305
      %v421 = vpop.permute.xlu0 %420
      %424 = vset.pattern.permute.xlu0 0
      %425 = vperm.xlu0 %424, %v306
      %v426 = vpop.permute.xlu0 %425
      %429 = vset.pattern.permute.xlu0 0
      %430 = vperm.xlu0 %429, %v307
      %v431 = vpop.permute.xlu0 %430
      %434 = vset.pattern.permute.xlu0 0
      %435 = vperm.xlu0 %434, %v308
      %v436 = vpop.permute.xlu0 %435
      %439 = vset.pattern.permute.xlu0 0
      %440 = vperm.xlu0 %439, %v309
      %v441 = vpop.permute.xlu0 %440
      %444 = vset.pattern.permute.xlu0 0
      %445 = vperm.xlu0 %444, %v310
      %v446 = vpop.permute.xlu0 %445
      %449 = vset.pattern.permute.xlu0 0
      %450 = vperm.xlu0 %449, %v311
      %v451 = vpop.permute.xlu0 %450
      %454 = vset.pattern.permute.xlu0 0
      %455 = vperm.xlu0 %454, %v312
      %v456 = vpop.permute.xlu0 %455
      %459 = vset.pattern.permute.xlu0 0
      %460 = vperm.xlu0 %459, %v313
      %v461 = vpop.permute.xlu0 %460
      %464 = vset.pattern.permute.xlu0 0
      %465 = vperm.xlu0 %464, %v314
      %v466 = vpop.permute.xlu0 %465
      %469 = vset.pattern.permute.xlu0 0
      %470 = vperm.xlu0 %469, %v315
      %v471 = vpop.permute.xlu0 %470
      %474 = vset.pattern.permute.xlu0 0
      %475 = vperm.xlu0 %474, %v316
      %v476 = vpop.permute.xlu0 %475
      %v479 = vlaneseq
      %v480 = vshrl.u32 %v479, 7
      %v481 = vsub.s32 0, %v480
      %v482 = vrot.slane %v317, %v481
      %v483 = vlaneseq
      %v484 = vshrl.u32 %v483, 7
      %v485 = vsub.s32 1, %v484
      %v486 = vrot.slane %v317, %v485
      %v489 = vmul.f32 %v321, %v482
      %v490 = vmul.f32 %v321, %v486
      %v491 = vmul.f32 %v326, %v482
      %v492 = vmul.f32 %v326, %v486
      %v493 = vmul.f32 %v331, %v482
      %v494 = vmul.f32 %v331, %v486
      %v495 = vmul.f32 %v336, %v482
      %v496 = vmul.f32 %v336, %v486
      %v497 = vmul.f32 %v341, %v482
      %v498 = vmul.f32 %v341, %v486
      %v499 = vmul.f32 %v346, %v482
      %v500 = vmul.f32 %v346, %v486
      %v501 = vmul.f32 %v351, %v482
      %v502 = vmul.f32 %v351, %v486
      %v503 = vmul.f32 %v356, %v482
      %v504 = vmul.f32 %v356, %v486
      %v505 = vmul.f32 %v361, %v482
      %v506 = vmul.f32 %v361, %v486
      %v507 = vmul.f32 %v366, %v482
      %v508 = vmul.f32 %v366, %v486
      %v509 = vmul.f32 %v371, %v482
      %v510 = vmul.f32 %v371, %v486
      %v511 = vmul.f32 %v376, %v482
      %v512 = vmul.f32 %v376, %v486
      %v513 = vmul.f32 %v381, %v482
      %v514 = vmul.f32 %v381, %v486
      %v515 = vmul.f32 %v386, %v482
      %v516 = vmul.f32 %v386, %v486
      %v517 = vmul.f32 %v391, %v482
      %v518 = vmul.f32 %v391, %v486
      %v519 = vmul.f32 %v396, %v482
      %v520 = vmul.f32 %v396, %v486
      %v521 = vmul.f32 %v401, %v482
      %v522 = vmul.f32 %v401, %v486
      %v523 = vmul.f32 %v406, %v482
      %v524 = vmul.f32 %v406, %v486
      %v525 = vmul.f32 %v411, %v482
      %v526 = vmul.f32 %v411, %v486
      %v527 = vmul.f32 %v416, %v482
      %v528 = vmul.f32 %v416, %v486
      %v529 = vmul.f32 %v421, %v482
      %v530 = vmul.f32 %v421, %v486
      %v531 = vmul.f32 %v426, %v482
      %v532 = vmul.f32 %v426, %v486
      %v533 = vmul.f32 %v431, %v482
      %v534 = vmul.f32 %v431, %v486
      %v535 = vmul.f32 %v436, %v482
      %v536 = vmul.f32 %v436, %v486
      %v537 = vmul.f32 %v441, %v482
      %v538 = vmul.f32 %v441, %v486
      %v539 = vmul.f32 %v446, %v482
      %v540 = vmul.f32 %v446, %v486
      %v541 = vmul.f32 %v451, %v482
      %v542 = vmul.f32 %v451, %v486
      %v543 = vmul.f32 %v456, %v482
      %v544 = vmul.f32 %v456, %v486
      %v545 = vmul.f32 %v461, %v482
      %v546 = vmul.f32 %v461, %v486
      %v547 = vmul.f32 %v466, %v482
      %v548 = vmul.f32 %v466, %v486
      %v549 = vmul.f32 %v471, %v482
      %v550 = vmul.f32 %v471, %v486
      %v551 = vmul.f32 %v476, %v482
      %v552 = vmul.f32 %v476, %v486
      %v553 = vld [vmem:[%s2] sm:$0x3]
      %v555 = vlaneseq
      %v556 = vshrl.u32 %v555, 7
      %v557 = vsub.s32 0, %v556
      %v558 = vrot.slane %v553, %v557
      %v559 = vlaneseq
      %v560 = vshrl.u32 %v559, 7
      %v561 = vsub.s32 1, %v560
      %v562 = vrot.slane %v553, %v561
      %v565 = vadd.f32 %v489, %v558
      %v566 = vadd.f32 %v490, %v562
      %v567 = vadd.f32 %v491, %v558
      %v568 = vadd.f32 %v492, %v562
      %v569 = vadd.f32 %v493, %v558
      %v570 = vadd.f32 %v494, %v562
      %v571 = vadd.f32 %v495, %v558
      %v572 = vadd.f32 %v496, %v562
      %v573 = vadd.f32 %v497, %v558
      %v574 = vadd.f32 %v498, %v562
      %v575 = vadd.f32 %v499, %v558
      %v576 = vadd.f32 %v500, %v562
      %v577 = vadd.f32 %v501, %v558
      %v578 = vadd.f32 %v502, %v562
      %v579 = vadd.f32 %v503, %v558
      %v580 = vadd.f32 %v504, %v562
      %v581 = vadd.f32 %v505, %v558
      %v582 = vadd.f32 %v506, %v562
      %v583 = vadd.f32 %v507, %v558
      %v584 = vadd.f32 %v508, %v562
      %v585 = vadd.f32 %v509, %v558
      %v586 = vadd.f32 %v510, %v562
      %v587 = vadd.f32 %v511, %v558
      %v588 = vadd.f32 %v512, %v562
      %v589 = vadd.f32 %v513, %v558
      %v590 = vadd.f32 %v514, %v562
      %v591 = vadd.f32 %v515, %v558
      %v592 = vadd.f32 %v516, %v562
      %v593 = vadd.f32 %v517, %v558
      %v594 = vadd.f32 %v518, %v562
      %v595 = vadd.f32 %v519, %v558
      %v596 = vadd.f32 %v520, %v562
      %v597 = vadd.f32 %v521, %v558
      %v598 = vadd.f32 %v522, %v562
      %v599 = vadd.f32 %v523, %v558
      %v600 = vadd.f32 %v524, %v562
      %v601 = vadd.f32 %v525, %v558
      %v602 = vadd.f32 %v526, %v562
      %v603 = vadd.f32 %v527, %v558
      %v604 = vadd.f32 %v528, %v562
      %v605 = vadd.f32 %v529, %v558
      %v606 = vadd.f32 %v530, %v562
      %v607 = vadd.f32 %v531, %v558
      %v608 = vadd.f32 %v532, %v562
      %v609 = vadd.f32 %v533, %v558
      %v610 = vadd.f32 %v534, %v562
      %v611 = vadd.f32 %v535, %v558
      %v612 = vadd.f32 %v536, %v562
      %v613 = vadd.f32 %v537, %v558
      %v614 = vadd.f32 %v538, %v562
      %v615 = vadd.f32 %v539, %v558
      %v616 = vadd.f32 %v540, %v562
      %v617 = vadd.f32 %v541, %v558
      %v618 = vadd.f32 %v542, %v562
      %v619 = vadd.f32 %v543, %v558
      %v620 = vadd.f32 %v544, %v562
      %v621 = vadd.f32 %v545, %v558
      %v622 = vadd.f32 %v546, %v562
      %v623 = vadd.f32 %v547, %v558
      %v624 = vadd.f32 %v548, %v562
      %v625 = vadd.f32 %v549, %v558
      %v626 = vadd.f32 %v550, %v562
      %v627 = vadd.f32 %v551, %v558
      %v628 = vadd.f32 %v552, %v562
      %v629 = vmax.f32 %v565, 0.0
      %v630 = vmax.f32 %v566, 0.0
      %v631 = vmax.f32 %v567, 0.0
      %v632 = vmax.f32 %v568, 0.0
      %v633 = vmax.f32 %v569, 0.0
      %v634 = vmax.f32 %v570, 0.0
      %v635 = vmax.f32 %v571, 0.0
      %v636 = vmax.f32 %v572, 0.0
      %v637 = vmax.f32 %v573, 0.0
      %v638 = vmax.f32 %v574, 0.0
      %v639 = vmax.f32 %v575, 0.0
      %v640 = vmax.f32 %v576, 0.0
      %v641 = vmax.f32 %v577, 0.0
      %v642 = vmax.f32 %v578, 0.0
      %v643 = vmax.f32 %v579, 0.0
      %v644 = vmax.f32 %v580, 0.0
      %v645 = vmax.f32 %v581, 0.0
      %v646 = vmax.f32 %v582, 0.0
      %v647 = vmax.f32 %v583, 0.0
      %v648 = vmax.f32 %v584, 0.0
      %v649 = vmax.f32 %v585, 0.0
      %v650 = vmax.f32 %v586, 0.0
      %v651 = vmax.f32 %v587, 0.0
      %v652 = vmax.f32 %v588, 0.0
      %v653 = vmax.f32 %v589, 0.0
      %v654 = vmax.f32 %v590, 0.0
      %v655 = vmax.f32 %v591, 0.0
      %v656 = vmax.f32 %v592, 0.0
      %v657 = vmax.f32 %v593, 0.0
      %v658 = vmax.f32 %v594, 0.0
      %v659 = vmax.f32 %v595, 0.0
      %v660 = vmax.f32 %v596, 0.0
      %v661 = vmax.f32 %v597, 0.0
      %v662 = vmax.f32 %v598, 0.0
      %v663 = vmax.f32 %v599, 0.0
      %v664 = vmax.f32 %v600, 0.0
      %v665 = vmax.f32 %v601, 0.0
      %v666 = vmax.f32 %v602, 0.0
      %v667 = vmax.f32 %v603, 0.0
      %v668 = vmax.f32 %v604, 0.0
      %v669 = vmax.f32 %v605, 0.0
      %v670 = vmax.f32 %v606, 0.0
      %v671 = vmax.f32 %v607, 0.0
      %v672 = vmax.f32 %v608, 0.0
      %v673 = vmax.f32 %v609, 0.0
      %v674 = vmax.f32 %v610, 0.0
      %v675 = vmax.f32 %v611, 0.0
      %v676 = vmax.f32 %v612, 0.0
      %v677 = vmax.f32 %v613, 0.0
      %v678 = vmax.f32 %v614, 0.0
      %v679 = vmax.f32 %v615, 0.0
      %v680 = vmax.f32 %v616, 0.0
      %v681 = vmax.f32 %v617, 0.0
      %v682 = vmax.f32 %v618, 0.0
      %v683 = vmax.f32 %v619, 0.0
      %v684 = vmax.f32 %v620, 0.0
      %v685 = vmax.f32 %v621, 0.0
      %v686 = vmax.f32 %v622, 0.0
      %v687 = vmax.f32 %v623, 0.0
      %v688 = vmax.f32 %v624, 0.0
      %v689 = vmax.f32 %v625, 0.0
      %v690 = vmax.f32 %v626, 0.0
      %v691 = vmax.f32 %v627, 0.0
      %v692 = vmax.f32 %v628, 0.0
      %v693 = vpack.c.bf16 %v631, %v629
      %v694 = vpack.c.bf16 %v632, %v630
      %v695 = vpack.c.bf16 %v635, %v633
      %v696 = vpack.c.bf16 %v636, %v634
      %v697 = vpack.c.bf16 %v639, %v637
      %v698 = vpack.c.bf16 %v640, %v638
      %v699 = vpack.c.bf16 %v643, %v641
      %v700 = vpack.c.bf16 %v644, %v642
      %v701 = vpack.c.bf16 %v647, %v645
      %v702 = vpack.c.bf16 %v648, %v646
      %v703 = vpack.c.bf16 %v651, %v649
      %v704 = vpack.c.bf16 %v652, %v650
      %v705 = vpack.c.bf16 %v655, %v653
      %v706 = vpack.c.bf16 %v656, %v654
      %v707 = vpack.c.bf16 %v659, %v657
      %v708 = vpack.c.bf16 %v660, %v658
      %v709 = vpack.c.bf16 %v663, %v661
      %v710 = vpack.c.bf16 %v664, %v662
      %v711 = vpack.c.bf16 %v667, %v665
      %v712 = vpack.c.bf16 %v668, %v666
      %v713 = vpack.c.bf16 %v671, %v669
      %v714 = vpack.c.bf16 %v672, %v670
      %v715 = vpack.c.bf16 %v675, %v673
      %v716 = vpack.c.bf16 %v676, %v674
      %v717 = vpack.c.bf16 %v679, %v677
      %v718 = vpack.c.bf16 %v680, %v678
      %v719 = vpack.c.bf16 %v683, %v681
      %v720 = vpack.c.bf16 %v684, %v682
      %v721 = vpack.c.bf16 %v687, %v685
      %v722 = vpack.c.bf16 %v688, %v686
      %v723 = vpack.c.bf16 %v691, %v689
      %v724 = vpack.c.bf16 %v692, %v690
      %v725 = vld [vmem:[%s3] sm:$0xff]
      %v726 = vld [vmem:[%s3 + $0x8] sm:$0xff]
      %v727 = vld [vmem:[%s3 + $0x10] sm:$0xff]
      %v728 = vld [vmem:[%s3 + $0x18] sm:$0xf]
      %v729 = vld [vmem:[%s3 + $0x1c] sm:$0xff]
      %v730 = vld [vmem:[%s3 + $0x24] sm:$0xff]
      %v731 = vld [vmem:[%s3 + $0x2c] sm:$0xff]
      %v732 = vld [vmem:[%s3 + $0x34] sm:$0xf]
      %v733 = vld [vmem:[%s3 + $0x38] sm:$0xff]
      %v734 = vld [vmem:[%s3 + $0x40] sm:$0xff]
      %v735 = vld [vmem:[%s3 + $0x48] sm:$0xff]
      %v736 = vld [vmem:[%s3 + $0x50] sm:$0xf]
      %v737 = vld [vmem:[%s3 + $0x54] sm:$0xff]
      %v738 = vld [vmem:[%s3 + $0x5c] sm:$0xff]
      %v739 = vld [vmem:[%s3 + $0x64] sm:$0xff]
      %v740 = vld [vmem:[%s3 + $0x6c] sm:$0xf]
      %v741 = vld [vmem:[%s3 + $0x70] sm:$0xff]
      %v742 = vld [vmem:[%s3 + $0x78] sm:$0xff]
      %v743 = vld [vmem:[%s3 + $0x80] sm:$0xff]
      %v744 = vld [vmem:[%s3 + $0x88] sm:$0xf]
      %v745 = vld [vmem:[%s3 + $0x8c] sm:$0xff]
      %v746 = vld [vmem:[%s3 + $0x94] sm:$0xff]
      %v747 = vld [vmem:[%s3 + $0x9c] sm:$0xff]
      %v748 = vld [vmem:[%s3 + $0xa4] sm:$0xf]
      %v749 = vld [vmem:[%s3 + $0xa8] sm:$0xff]
      %v750 = vld [vmem:[%s3 + $0xb0] sm:$0xff]
      %v751 = vld [vmem:[%s3 + $0xb8] sm:$0xff]
      %v752 = vld [vmem:[%s3 + $0xc0] sm:$0xf]
      %v753 = vld [vmem:[%s3 + $0xc4] sm:$0xff]
      %v754 = vld [vmem:[%s3 + $0xcc] sm:$0xff]
      %v755 = vld [vmem:[%s3 + $0xd4] sm:$0xff]
      %v756 = vld [vmem:[%s3 + $0xdc] sm:$0xf]
      %v757 = vld [vmem:[%s3 + $0xe0] sm:$0xff]
      %v758 = vld [vmem:[%s3 + $0xe8] sm:$0xff]
      %v759 = vld [vmem:[%s3 + $0xf0] sm:$0xff]
      %v760 = vld [vmem:[%s3 + $0xf8] sm:$0xf]
      %v761 = vld [vmem:[%s3 + $0xfc] sm:$0xff]
      %v762 = vld [vmem:[%s3 + $0x104] sm:$0xff]
      %v763 = vld [vmem:[%s3 + $0x10c] sm:$0xff]
      %v764 = vld [vmem:[%s3 + $0x114] sm:$0xf]
      %v765 = vld [vmem:[%s3 + $0x118] sm:$0xff]
      %v766 = vld [vmem:[%s3 + $0x120] sm:$0xff]
      %v767 = vld [vmem:[%s3 + $0x128] sm:$0xff]
      %v768 = vld [vmem:[%s3 + $0x130] sm:$0xf]
      %v769 = vld [vmem:[%s3 + $0x134] sm:$0xff]
      %v770 = vld [vmem:[%s3 + $0x13c] sm:$0xff]
      %v771 = vld [vmem:[%s3 + $0x144] sm:$0xff]
      %v772 = vld [vmem:[%s3 + $0x14c] sm:$0xf]
      %v773 = vld [vmem:[%s3 + $0x150] sm:$0xff]
      %v774 = vld [vmem:[%s3 + $0x158] sm:$0xff]
      %v775 = vld [vmem:[%s3 + $0x160] sm:$0xff]
      %v776 = vld [vmem:[%s3 + $0x168] sm:$0xf]
      %v777 = vld [vmem:[%s3 + $0x16c] sm:$0xff]
      %v778 = vld [vmem:[%s3 + $0x174] sm:$0xff]
      %v779 = vld [vmem:[%s3 + $0x17c] sm:$0xff]
      %v780 = vld [vmem:[%s3 + $0x184] sm:$0xf]
      %v781 = vld [vmem:[%s3 + $0x188] sm:$0xff]
      %v782 = vld [vmem:[%s3 + $0x190] sm:$0xff]
      %v783 = vld [vmem:[%s3 + $0x198] sm:$0xff]
      %v784 = vld [vmem:[%s3 + $0x1a0] sm:$0xf]
      %v785 = vld [vmem:[%s3 + $0x1a4] sm:$0xff]
      %v786 = vld [vmem:[%s3 + $0x1ac] sm:$0xff]
      %v787 = vld [vmem:[%s3 + $0x1b4] sm:$0xff]
      %v788 = vld [vmem:[%s3 + $0x1bc] sm:$0xf]
      %v789 = vld [vmem:[%s3 + $0x1c0] sm:$0xff]
      %v790 = vld [vmem:[%s3 + $0x1c8] sm:$0xff]
      %v791 = vld [vmem:[%s3 + $0x1d0] sm:$0xff]
      %v792 = vld [vmem:[%s3 + $0x1d8] sm:$0xf]
      %v793 = vld [vmem:[%s3 + $0x1dc] sm:$0xff]
      %v794 = vld [vmem:[%s3 + $0x1e4] sm:$0xff]
      %v795 = vld [vmem:[%s3 + $0x1ec] sm:$0xff]
      %v796 = vld [vmem:[%s3 + $0x1f4] sm:$0xf]
      %v797 = vld [vmem:[%s3 + $0x1f8] sm:$0xff]
      %v798 = vld [vmem:[%s3 + $0x200] sm:$0xff]
      %v799 = vld [vmem:[%s3 + $0x208] sm:$0xff]
      %v800 = vld [vmem:[%s3 + $0x210] sm:$0xf]
      %v801 = vld [vmem:[%s3 + $0x214] sm:$0xff]
      %v802 = vld [vmem:[%s3 + $0x21c] sm:$0xff]
      %v803 = vld [vmem:[%s3 + $0x224] sm:$0xff]
      %v804 = vld [vmem:[%s3 + $0x22c] sm:$0xf]
      %v805 = vld [vmem:[%s3 + $0x230] sm:$0xff]
      %v806 = vld [vmem:[%s3 + $0x238] sm:$0xff]
      %v807 = vld [vmem:[%s3 + $0x240] sm:$0xff]
      %v808 = vld [vmem:[%s3 + $0x248] sm:$0xf]
      %v809 = vld [vmem:[%s3 + $0x24c] sm:$0xff]
      %v810 = vld [vmem:[%s3 + $0x254] sm:$0xff]
      %v811 = vld [vmem:[%s3 + $0x25c] sm:$0xff]
      %v812 = vld [vmem:[%s3 + $0x264] sm:$0xf]
      %v813 = vld [vmem:[%s3 + $0x268] sm:$0xff]
      %v814 = vld [vmem:[%s3 + $0x270] sm:$0xff]
      %v815 = vld [vmem:[%s3 + $0x278] sm:$0xff]
      %v816 = vld [vmem:[%s3 + $0x280] sm:$0xf]
      %v817 = vld [vmem:[%s3 + $0x284] sm:$0xff]
      %v818 = vld [vmem:[%s3 + $0x28c] sm:$0xff]
      %v819 = vld [vmem:[%s3 + $0x294] sm:$0xff]
      %v820 = vld [vmem:[%s3 + $0x29c] sm:$0xf]
      %v821 = vld [vmem:[%s3 + $0x2a0] sm:$0xff]
      %v822 = vld [vmem:[%s3 + $0x2a8] sm:$0xff]
      %v823 = vld [vmem:[%s3 + $0x2b0] sm:$0xff]
      %v824 = vld [vmem:[%s3 + $0x2b8] sm:$0xf]
      %v825 = vld [vmem:[%s3 + $0x2bc] sm:$0xff]
      %v826 = vld [vmem:[%s3 + $0x2c4] sm:$0xff]
      %v827 = vld [vmem:[%s3 + $0x2cc] sm:$0xff]
      %v828 = vld [vmem:[%s3 + $0x2d4] sm:$0xf]
      %v829 = vld [vmem:[%s3 + $0x2d8] sm:$0xff]
      %v830 = vld [vmem:[%s3 + $0x2e0] sm:$0xff]
      %v831 = vld [vmem:[%s3 + $0x2e8] sm:$0xff]
      %v832 = vld [vmem:[%s3 + $0x2f0] sm:$0xf]
      %v833 = vld [vmem:[%s3 + $0x2f4] sm:$0xff]
      %v834 = vld [vmem:[%s3 + $0x2fc] sm:$0xff]
      %v835 = vld [vmem:[%s3 + $0x304] sm:$0xff]
      %v836 = vld [vmem:[%s3 + $0x30c] sm:$0xf]
      %v837 = vld [vmem:[%s3 + $0x310] sm:$0xff]
      %v838 = vld [vmem:[%s3 + $0x318] sm:$0xff]
      %v839 = vld [vmem:[%s3 + $0x320] sm:$0xff]
      %v840 = vld [vmem:[%s3 + $0x328] sm:$0xf]
      %v841 = vld [vmem:[%s3 + $0x32c] sm:$0xff]
      %v842 = vld [vmem:[%s3 + $0x334] sm:$0xff]
      %v843 = vld [vmem:[%s3 + $0x33c] sm:$0xff]
      %v844 = vld [vmem:[%s3 + $0x344] sm:$0xf]
      %v845 = vld [vmem:[%s3 + $0x348] sm:$0xff]
      %v846 = vld [vmem:[%s3 + $0x350] sm:$0xff]
      %v847 = vld [vmem:[%s3 + $0x358] sm:$0xff]
      %v848 = vld [vmem:[%s3 + $0x360] sm:$0xf]
      %v849 = vld [vmem:[%s3 + $0x364] sm:$0xff]
      %v850 = vld [vmem:[%s3 + $0x36c] sm:$0xff]
      %v851 = vld [vmem:[%s3 + $0x374] sm:$0xff]
      %v852 = vld [vmem:[%s3 + $0x37c] sm:$0xf]
      %v853 = vld [vmem:[%s4] sm:$0x7f]
      %v855 = vlaneseq
      %v856 = vshrl.u32 %v855, 7
      %v857 = vsub.s32 0, %v856
      %v858 = vrot.slane %v853, %v857
      %v859 = vlaneseq
      %v860 = vshrl.u32 %v859, 7
      %v861 = vsub.s32 1, %v860
      %v862 = vrot.slane %v853, %v861
      %v863 = vlaneseq
      %v864 = vshrl.u32 %v863, 7
      %v865 = vsub.s32 2, %v864
      %v866 = vrot.slane %v853, %v865
      %v867 = vlaneseq
      %v868 = vshrl.u32 %v867, 7
      %v869 = vsub.s32 3, %v868
      %v870 = vrot.slane %v853, %v869
      %v871 = vlaneseq
      %v872 = vshrl.u32 %v871, 7
      %v873 = vsub.s32 4, %v872
      %v874 = vrot.slane %v853, %v873
      %v875 = vlaneseq
      %v876 = vshrl.u32 %v875, 7
      %v877 = vsub.s32 5, %v876
      %v878 = vrot.slane %v853, %v877
      %v879 = vlaneseq
      %v880 = vshrl.u32 %v879, 7
      %v881 = vsub.s32 6, %v880
      %v882 = vrot.slane %v853, %v881
      %v1018 = vunpack.c.l.b16 %v725
      %v1019 = vunpack.c.h.b16 %v725
      %v1020 = vunpack.c.l.b16 %v726
      %v1021 = vunpack.c.h.b16 %v726
      %v1022 = vunpack.c.l.b16 %v727
      %v1023 = vunpack.c.h.b16 %v727
      %v1024 = vunpack.c.l.b16 %v728
      %v1025 = vunpack.c.l.b16 %v729
      %v1026 = vunpack.c.h.b16 %v729
      %v1027 = vunpack.c.l.b16 %v730
      %v1028 = vunpack.c.h.b16 %v730
      %v1029 = vunpack.c.l.b16 %v731
      %v1030 = vunpack.c.h.b16 %v731
      %v1031 = vunpack.c.l.b16 %v732
      %v1032 = vunpack.c.l.b16 %v733
      %v1033 = vunpack.c.h.b16 %v733
      %v1034 = vunpack.c.l.b16 %v734
      %v1035 = vunpack.c.h.b16 %v734
      %v1036 = vunpack.c.l.b16 %v735
      %v1037 = vunpack.c.h.b16 %v735
      %v1038 = vunpack.c.l.b16 %v736
      %v1039 = vunpack.c.l.b16 %v737
      %v1040 = vunpack.c.h.b16 %v737
      %v1041 = vunpack.c.l.b16 %v738
      %v1042 = vunpack.c.h.b16 %v738
      %v1043 = vunpack.c.l.b16 %v739
      %v1044 = vunpack.c.h.b16 %v739
      %v1045 = vunpack.c.l.b16 %v740
      %v1046 = vunpack.c.l.b16 %v741
      %v1047 = vunpack.c.h.b16 %v741
      %v1048 = vunpack.c.l.b16 %v742
      %v1049 = vunpack.c.h.b16 %v742
      %v1050 = vunpack.c.l.b16 %v743
      %v1051 = vunpack.c.h.b16 %v743
      %v1052 = vunpack.c.l.b16 %v744
      %v1053 = vunpack.c.l.b16 %v745
      %v1054 = vunpack.c.h.b16 %v745
      %v1055 = vunpack.c.l.b16 %v746
      %v1056 = vunpack.c.h.b16 %v746
      %v1057 = vunpack.c.l.b16 %v747
      %v1058 = vunpack.c.h.b16 %v747
      %v1059 = vunpack.c.l.b16 %v748
      %v1060 = vunpack.c.l.b16 %v749
      %v1061 = vunpack.c.h.b16 %v749
      %v1062 = vunpack.c.l.b16 %v750
      %v1063 = vunpack.c.h.b16 %v750
      %v1064 = vunpack.c.l.b16 %v751
      %v1065 = vunpack.c.h.b16 %v751
      %v1066 = vunpack.c.l.b16 %v752
      %v1067 = vunpack.c.l.b16 %v753
      %v1068 = vunpack.c.h.b16 %v753
      %v1069 = vunpack.c.l.b16 %v754
      %v1070 = vunpack.c.h.b16 %v754
      %v1071 = vunpack.c.l.b16 %v755
      %v1072 = vunpack.c.h.b16 %v755
      %v1073 = vunpack.c.l.b16 %v756
      %v1074 = vunpack.c.l.b16 %v757
      %v1075 = vunpack.c.h.b16 %v757
      %v1076 = vunpack.c.l.b16 %v758
      %v1077 = vunpack.c.h.b16 %v758
      %v1078 = vunpack.c.l.b16 %v759
      %v1079 = vunpack.c.h.b16 %v759
      %v1080 = vunpack.c.l.b16 %v760
      %v1081 = vunpack.c.l.b16 %v761
      %v1082 = vunpack.c.h.b16 %v761
      %v1083 = vunpack.c.l.b16 %v762
      %v1084 = vunpack.c.h.b16 %v762
      %v1085 = vunpack.c.l.b16 %v763
      %v1086 = vunpack.c.h.b16 %v763
      %v1087 = vunpack.c.l.b16 %v764
      %v1088 = vunpack.c.l.b16 %v765
      %v1089 = vunpack.c.h.b16 %v765
      %v1090 = vunpack.c.l.b16 %v766
      %v1091 = vunpack.c.h.b16 %v766
      %v1092 = vunpack.c.l.b16 %v767
      %v1093 = vunpack.c.h.b16 %v767
      %v1094 = vunpack.c.l.b16 %v768
      %v1095 = vunpack.c.l.b16 %v769
      %v1096 = vunpack.c.h.b16 %v769
      %v1097 = vunpack.c.l.b16 %v770
      %v1098 = vunpack.c.h.b16 %v770
      %v1099 = vunpack.c.l.b16 %v771
      %v1100 = vunpack.c.h.b16 %v771
      %v1101 = vunpack.c.l.b16 %v772
      %v1102 = vunpack.c.l.b16 %v773
      %v1103 = vunpack.c.h.b16 %v773
      %v1104 = vunpack.c.l.b16 %v774
      %v1105 = vunpack.c.h.b16 %v774
      %v1106 = vunpack.c.l.b16 %v775
      %v1107 = vunpack.c.h.b16 %v775
      %v1108 = vunpack.c.l.b16 %v776
      %v1109 = vunpack.c.l.b16 %v777
      %v1110 = vunpack.c.h.b16 %v777
      %v1111 = vunpack.c.l.b16 %v778
      %v1112 = vunpack.c.h.b16 %v778
      %v1113 = vunpack.c.l.b16 %v779
      %v1114 = vunpack.c.h.b16 %v779
      %v1115 = vunpack.c.l.b16 %v780
      %v1116 = vunpack.c.l.b16 %v781
      %v1117 = vunpack.c.h.b16 %v781
      %v1118 = vunpack.c.l.b16 %v782
      %v1119 = vunpack.c.h.b16 %v782
      %v1120 = vunpack.c.l.b16 %v783
      %v1121 = vunpack.c.h.b16 %v783
      %v1122 = vunpack.c.l.b16 %v784
      %v1123 = vunpack.c.l.b16 %v785
      %v1124 = vunpack.c.h.b16 %v785
      %v1125 = vunpack.c.l.b16 %v786
      %v1126 = vunpack.c.h.b16 %v786
      %v1127 = vunpack.c.l.b16 %v787
      %v1128 = vunpack.c.h.b16 %v787
      %v1129 = vunpack.c.l.b16 %v788
      %v1130 = vunpack.c.l.b16 %v789
      %v1131 = vunpack.c.h.b16 %v789
      %v1132 = vunpack.c.l.b16 %v790
      %v1133 = vunpack.c.h.b16 %v790
      %v1134 = vunpack.c.l.b16 %v791
      %v1135 = vunpack.c.h.b16 %v791
      %v1136 = vunpack.c.l.b16 %v792
      %v1137 = vunpack.c.l.b16 %v793
      %v1138 = vunpack.c.h.b16 %v793
      %v1139 = vunpack.c.l.b16 %v794
      %v1140 = vunpack.c.h.b16 %v794
      %v1141 = vunpack.c.l.b16 %v795
      %v1142 = vunpack.c.h.b16 %v795
      %v1143 = vunpack.c.l.b16 %v796
      %v1144 = vunpack.c.l.b16 %v797
      %v1145 = vunpack.c.h.b16 %v797
      %v1146 = vunpack.c.l.b16 %v798
      %v1147 = vunpack.c.h.b16 %v798
      %v1148 = vunpack.c.l.b16 %v799
      %v1149 = vunpack.c.h.b16 %v799
      %v1150 = vunpack.c.l.b16 %v800
      %v1151 = vunpack.c.l.b16 %v801
      %v1152 = vunpack.c.h.b16 %v801
      %v1153 = vunpack.c.l.b16 %v802
      %v1154 = vunpack.c.h.b16 %v802
      %v1155 = vunpack.c.l.b16 %v803
      %v1156 = vunpack.c.h.b16 %v803
      %v1157 = vunpack.c.l.b16 %v804
      %v1158 = vunpack.c.l.b16 %v805
      %v1159 = vunpack.c.h.b16 %v805
      %v1160 = vunpack.c.l.b16 %v806
      %v1161 = vunpack.c.h.b16 %v806
      %v1162 = vunpack.c.l.b16 %v807
      %v1163 = vunpack.c.h.b16 %v807
      %v1164 = vunpack.c.l.b16 %v808
      %v1165 = vunpack.c.l.b16 %v809
      %v1166 = vunpack.c.h.b16 %v809
      %v1167 = vunpack.c.l.b16 %v810
      %v1168 = vunpack.c.h.b16 %v810
      %v1169 = vunpack.c.l.b16 %v811
      %v1170 = vunpack.c.h.b16 %v811
      %v1171 = vunpack.c.l.b16 %v812
      %v1172 = vunpack.c.l.b16 %v813
      %v1173 = vunpack.c.h.b16 %v813
      %v1174 = vunpack.c.l.b16 %v814
      %v1175 = vunpack.c.h.b16 %v814
      %v1176 = vunpack.c.l.b16 %v815
      %v1177 = vunpack.c.h.b16 %v815
      %v1178 = vunpack.c.l.b16 %v816
      %v1179 = vunpack.c.l.b16 %v817
      %v1180 = vunpack.c.h.b16 %v817
      %v1181 = vunpack.c.l.b16 %v818
      %v1182 = vunpack.c.h.b16 %v818
      %v1183 = vunpack.c.l.b16 %v819
      %v1184 = vunpack.c.h.b16 %v819
      %v1185 = vunpack.c.l.b16 %v820
      %v1186 = vunpack.c.l.b16 %v821
      %v1187 = vunpack.c.h.b16 %v821
      %v1188 = vunpack.c.l.b16 %v822
      %v1189 = vunpack.c.h.b16 %v822
      %v1190 = vunpack.c.l.b16 %v823
      %v1191 = vunpack.c.h.b16 %v823
      %v1192 = vunpack.c.l.b16 %v824
      %v1193 = vunpack.c.l.b16 %v825
      %v1194 = vunpack.c.h.b16 %v825
      %v1195 = vunpack.c.l.b16 %v826
      %v1196 = vunpack.c.h.b16 %v826
      %v1197 = vunpack.c.l.b16 %v827
      %v1198 = vunpack.c.h.b16 %v827
      %v1199 = vunpack.c.l.b16 %v828
      %v1200 = vunpack.c.l.b16 %v829
      %v1201 = vunpack.c.h.b16 %v829
      %v1202 = vunpack.c.l.b16 %v830
      %v1203 = vunpack.c.h.b16 %v830
      %v1204 = vunpack.c.l.b16 %v831
      %v1205 = vunpack.c.h.b16 %v831
      %v1206 = vunpack.c.l.b16 %v832
      %v1207 = vunpack.c.l.b16 %v833
      %v1208 = vunpack.c.h.b16 %v833
      %v1209 = vunpack.c.l.b16 %v834
      %v1210 = vunpack.c.h.b16 %v834
      %v1211 = vunpack.c.l.b16 %v835
      %v1212 = vunpack.c.h.b16 %v835
      %v1213 = vunpack.c.l.b16 %v836
      %v1214 = vunpack.c.l.b16 %v837
      %v1215 = vunpack.c.h.b16 %v837
      %v1216 = vunpack.c.l.b16 %v838
      %v1217 = vunpack.c.h.b16 %v838
      %v1218 = vunpack.c.l.b16 %v839
      %v1219 = vunpack.c.h.b16 %v839
      %v1220 = vunpack.c.l.b16 %v840
      %v1221 = vunpack.c.l.b16 %v841
      %v1222 = vunpack.c.h.b16 %v841
      %v1223 = vunpack.c.l.b16 %v842
      %v1224 = vunpack.c.h.b16 %v842
      %v1225 = vunpack.c.l.b16 %v843
      %v1226 = vunpack.c.h.b16 %v843
      %v1227 = vunpack.c.l.b16 %v844
      %v1228 = vunpack.c.l.b16 %v845
      %v1229 = vunpack.c.h.b16 %v845
      %v1230 = vunpack.c.l.b16 %v846
      %v1231 = vunpack.c.h.b16 %v846
      %v1232 = vunpack.c.l.b16 %v847
      %v1233 = vunpack.c.h.b16 %v847
      %v1234 = vunpack.c.l.b16 %v848
      %v1235 = vunpack.c.l.b16 %v849
      %v1236 = vunpack.c.h.b16 %v849
      %v1237 = vunpack.c.l.b16 %v850
      %v1238 = vunpack.c.h.b16 %v850
      %v1239 = vunpack.c.l.b16 %v851
      %v1240 = vunpack.c.h.b16 %v851
      %v1241 = vunpack.c.l.b16 %v852
      %v1242 = vpack.c.b16 %v1025, %v1018
      %v1243 = vpack.c.b16 %v1026, %v1019
      %v1244 = vpack.c.b16 %v1027, %v1020
      %v1245 = vpack.c.b16 %v1028, %v1021
      %v1246 = vpack.c.b16 %v1029, %v1022
      %v1247 = vpack.c.b16 %v1030, %v1023
      %v1248 = vpack.c.b16 %v1031, %v1024
      %v1249 = vpack.c.b16 %v1039, %v1032
      %v1250 = vpack.c.b16 %v1040, %v1033
      %v1251 = vpack.c.b16 %v1041, %v1034
      %v1252 = vpack.c.b16 %v1042, %v1035
      %v1253 = vpack.c.b16 %v1043, %v1036
      %v1254 = vpack.c.b16 %v1044, %v1037
      %v1255 = vpack.c.b16 %v1045, %v1038
      %v1256 = vpack.c.b16 %v1053, %v1046
      %v1257 = vpack.c.b16 %v1054, %v1047
      %v1258 = vpack.c.b16 %v1055, %v1048
      %v1259 = vpack.c.b16 %v1056, %v1049
      %v1260 = vpack.c.b16 %v1057, %v1050
      %v1261 = vpack.c.b16 %v1058, %v1051
      %v1262 = vpack.c.b16 %v1059, %v1052
      %v1263 = vpack.c.b16 %v1067, %v1060
      %v1264 = vpack.c.b16 %v1068, %v1061
      %v1265 = vpack.c.b16 %v1069, %v1062
      %v1266 = vpack.c.b16 %v1070, %v1063
      %v1267 = vpack.c.b16 %v1071, %v1064
      %v1268 = vpack.c.b16 %v1072, %v1065
      %v1269 = vpack.c.b16 %v1073, %v1066
      %v1270 = vpack.c.b16 %v1081, %v1074
      %v1271 = vpack.c.b16 %v1082, %v1075
      %v1272 = vpack.c.b16 %v1083, %v1076
      %v1273 = vpack.c.b16 %v1084, %v1077
      %v1274 = vpack.c.b16 %v1085, %v1078
      %v1275 = vpack.c.b16 %v1086, %v1079
      %v1276 = vpack.c.b16 %v1087, %v1080
      %v1277 = vpack.c.b16 %v1095, %v1088
      %v1278 = vpack.c.b16 %v1096, %v1089
      %v1279 = vpack.c.b16 %v1097, %v1090
      %v1280 = vpack.c.b16 %v1098, %v1091
      %v1281 = vpack.c.b16 %v1099, %v1092
      %v1282 = vpack.c.b16 %v1100, %v1093
      %v1283 = vpack.c.b16 %v1101, %v1094
      %v1284 = vpack.c.b16 %v1109, %v1102
      %v1285 = vpack.c.b16 %v1110, %v1103
      %v1286 = vpack.c.b16 %v1111, %v1104
      %v1287 = vpack.c.b16 %v1112, %v1105
      %v1288 = vpack.c.b16 %v1113, %v1106
      %v1289 = vpack.c.b16 %v1114, %v1107
      %v1290 = vpack.c.b16 %v1115, %v1108
      %v1291 = vpack.c.b16 %v1123, %v1116
      %v1292 = vpack.c.b16 %v1124, %v1117
      %v1293 = vpack.c.b16 %v1125, %v1118
      %v1294 = vpack.c.b16 %v1126, %v1119
      %v1295 = vpack.c.b16 %v1127, %v1120
      %v1296 = vpack.c.b16 %v1128, %v1121
      %v1297 = vpack.c.b16 %v1129, %v1122
      %v1298 = vpack.c.b16 %v1137, %v1130
      %v1299 = vpack.c.b16 %v1138, %v1131
      %v1300 = vpack.c.b16 %v1139, %v1132
      %v1301 = vpack.c.b16 %v1140, %v1133
      %v1302 = vpack.c.b16 %v1141, %v1134
      %v1303 = vpack.c.b16 %v1142, %v1135
      %v1304 = vpack.c.b16 %v1143, %v1136
      %v1305 = vpack.c.b16 %v1151, %v1144
      %v1306 = vpack.c.b16 %v1152, %v1145
      %v1307 = vpack.c.b16 %v1153, %v1146
      %v1308 = vpack.c.b16 %v1154, %v1147
      %v1309 = vpack.c.b16 %v1155, %v1148
      %v1310 = vpack.c.b16 %v1156, %v1149
      %v1311 = vpack.c.b16 %v1157, %v1150
      %v1312 = vpack.c.b16 %v1165, %v1158
      %v1313 = vpack.c.b16 %v1166, %v1159
      %v1314 = vpack.c.b16 %v1167, %v1160
      %v1315 = vpack.c.b16 %v1168, %v1161
      %v1316 = vpack.c.b16 %v1169, %v1162
      %v1317 = vpack.c.b16 %v1170, %v1163
      %v1318 = vpack.c.b16 %v1171, %v1164
      %v1319 = vpack.c.b16 %v1179, %v1172
      %v1320 = vpack.c.b16 %v1180, %v1173
      %v1321 = vpack.c.b16 %v1181, %v1174
      %v1322 = vpack.c.b16 %v1182, %v1175
      %v1323 = vpack.c.b16 %v1183, %v1176
      %v1324 = vpack.c.b16 %v1184, %v1177
      %v1325 = vpack.c.b16 %v1185, %v1178
      %v1326 = vpack.c.b16 %v1193, %v1186
      %v1327 = vpack.c.b16 %v1194, %v1187
      %v1328 = vpack.c.b16 %v1195, %v1188
      %v1329 = vpack.c.b16 %v1196, %v1189
      %v1330 = vpack.c.b16 %v1197, %v1190
      %v1331 = vpack.c.b16 %v1198, %v1191
      %v1332 = vpack.c.b16 %v1199, %v1192
      %v1333 = vpack.c.b16 %v1207, %v1200
      %v1334 = vpack.c.b16 %v1208, %v1201
      %v1335 = vpack.c.b16 %v1209, %v1202
      %v1336 = vpack.c.b16 %v1210, %v1203
      %v1337 = vpack.c.b16 %v1211, %v1204
      %v1338 = vpack.c.b16 %v1212, %v1205
      %v1339 = vpack.c.b16 %v1213, %v1206
      %v1340 = vpack.c.b16 %v1221, %v1214
      %v1341 = vpack.c.b16 %v1222, %v1215
      %v1342 = vpack.c.b16 %v1223, %v1216
      %v1343 = vpack.c.b16 %v1224, %v1217
      %v1344 = vpack.c.b16 %v1225, %v1218
      %v1345 = vpack.c.b16 %v1226, %v1219
      %v1346 = vpack.c.b16 %v1227, %v1220
      %v1347 = vpack.c.b16 %v1235, %v1228
      %v1348 = vpack.c.b16 %v1236, %v1229
      %v1349 = vpack.c.b16 %v1237, %v1230
      %v1350 = vpack.c.b16 %v1238, %v1231
      %v1351 = vpack.c.b16 %v1239, %v1232
      %v1352 = vpack.c.b16 %v1240, %v1233
      %v1353 = vpack.c.b16 %v1241, %v1234
      %1466 = vmatprep.subr.bf16.mxu0 %v1292
      %1467 = vmatpush1.bf16.msra.mxu0 %v1291
      %1468 = vmatprep.subr.bf16.mxu0 %v1285
      %1469 = vmatpush1.bf16.msra.mxu0 %v1284
      %1470 = vmatprep.subr.bf16.mxu0 %v1278
      %1471 = vmatpush1.bf16.msra.mxu0 %v1277
      %1472 = vmatprep.subr.bf16.mxu0 %v1271
      %1473 = vmatpush1.bf16.msra.mxu0 %v1270
      %1474 = vmatprep.subr.bf16.mxu0 %v1264
      %1475 = vmatpush1.bf16.msra.mxu0 %v1263
      %1476 = vmatprep.subr.bf16.mxu0 %v1257
      %1477 = vmatpush1.bf16.msra.mxu0 %v1256
      %1478 = vmatprep.subr.bf16.mxu0 %v1250
      %1479 = vmatpush1.bf16.msra.mxu0 %v1249
      %1480 = vmatprep.subr.bf16.mxu0 %v1243
      %1481 = vmatpush1.bf16.msra.mxu0 %v1242
      %1482 = vmatprep.subr.bf16.mxu0 %v1348
      %1483 = vmatpush2.bf16.msra.mxu0 %v1347
      %1484 = vmatprep.subr.bf16.mxu0 %v1341
      %1485 = vmatpush2.bf16.msra.mxu0 %v1340
      %1486 = vmatprep.subr.bf16.mxu0 %v1334
      %1487 = vmatpush2.bf16.msra.mxu0 %v1333
      %1488 = vmatprep.subr.bf16.mxu0 %v1327
      %1489 = vmatpush2.bf16.msra.mxu0 %v1326
      %1490 = vmatprep.subr.bf16.mxu0 %v1320
      %1491 = vmatpush2.bf16.msra.mxu0 %v1319
      %1492 = vmatprep.subr.bf16.mxu0 %v1313
      %1493 = vmatpush2.bf16.msra.mxu0 %v1312
      %1494 = vmatprep.subr.bf16.mxu0 %v1306
      %1495 = vmatpush2.bf16.msra.mxu0 %v1305
      %1496 = vmatprep.subr.bf16.mxu0 %v1299
      %1497 = vmatpush2.bf16.msra.mxu0 %v1298
      %1498 = vmatprep.mubr.bf16.mxu0 %v694
      %1499 = vmatmul.mubr.bf16.gmra.mxu0 %v693
      %v1500 = vpop.f32.mrf.mxu0
      %v1501 = vadd.f32 %v858, %v1500
      %v1502 = vpop.f32.mrf.mxu0
      %v1503 = vadd.f32 %v862, %v1502
      %v1504 = vpop.f32.mrf.mxu0
      %v1505 = vadd.f32 %v858, %v1504
      %v1506 = vpop.f32.mrf.mxu0
      %v1507 = vadd.f32 %v862, %v1506
      %1508 = vmatprep.mubr.bf16.mxu0 %v696
      %1509 = vmatmul.mubr.bf16.gmra.mxu0 %v695
      %v1510 = vpop.f32.mrf.mxu0
      %v1511 = vadd.f32 %v858, %v1510
      %v1512 = vpop.f32.mrf.mxu0
      %v1513 = vadd.f32 %v862, %v1512
      %v1514 = vpop.f32.mrf.mxu0
      %v1515 = vadd.f32 %v858, %v1514
      %v1516 = vpop.f32.mrf.mxu0
      %v1517 = vadd.f32 %v862, %v1516
      %1518 = vmatprep.mubr.bf16.mxu0 %v698
      %1519 = vmatmul.mubr.bf16.gmra.mxu0 %v697
      %v1520 = vpop.f32.mrf.mxu0
      %v1521 = vadd.f32 %v858, %v1520
      %v1522 = vpop.f32.mrf.mxu0
      %v1523 = vadd.f32 %v862, %v1522
      %v1524 = vpop.f32.mrf.mxu0
      %v1525 = vadd.f32 %v858, %v1524
      %v1526 = vpop.f32.mrf.mxu0
      %v1527 = vadd.f32 %v862, %v1526
      %1528 = vmatprep.mubr.bf16.mxu0 %v700
      %1529 = vmatmul.mubr.bf16.gmra.mxu0 %v699
      %v1530 = vpop.f32.mrf.mxu0
      %v1531 = vadd.f32 %v858, %v1530
      %v1532 = vpop.f32.mrf.mxu0
      %v1533 = vadd.f32 %v862, %v1532
      %v1534 = vpop.f32.mrf.mxu0
      %v1535 = vadd.f32 %v858, %v1534
      %v1536 = vpop.f32.mrf.mxu0
      %v1537 = vadd.f32 %v862, %v1536
      %1538 = vmatprep.mubr.bf16.mxu0 %v702
      %1539 = vmatmul.mubr.bf16.gmra.mxu0 %v701
      %v1540 = vpop.f32.mrf.mxu0
      %v1541 = vadd.f32 %v858, %v1540
      %v1542 = vpop.f32.mrf.mxu0
      %v1543 = vadd.f32 %v862, %v1542
      %v1544 = vpop.f32.mrf.mxu0
      %v1545 = vadd.f32 %v858, %v1544
      %v1546 = vpop.f32.mrf.mxu0
      %v1547 = vadd.f32 %v862, %v1546
      %1548 = vmatprep.mubr.bf16.mxu0 %v704
      %1549 = vmatmul.mubr.bf16.gmra.mxu0 %v703
      %v1550 = vpop.f32.mrf.mxu0
      %v1551 = vadd.f32 %v858, %v1550
      %v1552 = vpop.f32.mrf.mxu0
      %v1553 = vadd.f32 %v862, %v1552
      %v1554 = vpop.f32.mrf.mxu0
      %v1555 = vadd.f32 %v858, %v1554
      %v1556 = vpop.f32.mrf.mxu0
      %v1557 = vadd.f32 %v862, %v1556
      %1558 = vmatprep.mubr.bf16.mxu0 %v706
      %1559 = vmatmul.mubr.bf16.gmra.mxu0 %v705
      %v1560 = vpop.f32.mrf.mxu0
      %v1561 = vadd.f32 %v858, %v1560
      %v1562 = vpop.f32.mrf.mxu0
      %v1563 = vadd.f32 %v862, %v1562
      %v1564 = vpop.f32.mrf.mxu0
      %v1565 = vadd.f32 %v858, %v1564
      %v1566 = vpop.f32.mrf.mxu0
      %v1567 = vadd.f32 %v862, %v1566
      %1568 = vmatprep.mubr.bf16.mxu0 %v708
      %1569 = vmatmul.mubr.bf16.gmra.mxu0 %v707
      %v1570 = vpop.f32.mrf.mxu0
      %v1571 = vadd.f32 %v858, %v1570
      %v1572 = vpop.f32.mrf.mxu0
      %v1573 = vadd.f32 %v862, %v1572
      %v1574 = vpop.f32.mrf.mxu0
      %v1575 = vadd.f32 %v858, %v1574
      %v1576 = vpop.f32.mrf.mxu0
      %v1577 = vadd.f32 %v862, %v1576
      %1578 = vmatprep.mubr.bf16.mxu0 %v710
      %1579 = vmatmul.mubr.bf16.gmra.mxu0 %v709
      %v1580 = vpop.f32.mrf.mxu0
      %v1581 = vadd.f32 %v858, %v1580
      %v1582 = vpop.f32.mrf.mxu0
      %v1583 = vadd.f32 %v862, %v1582
      %v1584 = vpop.f32.mrf.mxu0
      %v1585 = vadd.f32 %v858, %v1584
      %v1586 = vpop.f32.mrf.mxu0
      %v1587 = vadd.f32 %v862, %v1586
      %1588 = vmatprep.mubr.bf16.mxu0 %v712
      %1589 = vmatmul.mubr.bf16.gmra.mxu0 %v711
      %v1590 = vpop.f32.mrf.mxu0
      %v1591 = vadd.f32 %v858, %v1590
      %v1592 = vpop.f32.mrf.mxu0
      %v1593 = vadd.f32 %v862, %v1592
      %v1594 = vpop.f32.mrf.mxu0
      %v1595 = vadd.f32 %v858, %v1594
      %v1596 = vpop.f32.mrf.mxu0
      %v1597 = vadd.f32 %v862, %v1596
      %1598 = vmatprep.mubr.bf16.mxu0 %v714
      %1599 = vmatmul.mubr.bf16.gmra.mxu0 %v713
      %v1600 = vpop.f32.mrf.mxu0
      %v1601 = vadd.f32 %v858, %v1600
      %v1602 = vpop.f32.mrf.mxu0
      %v1603 = vadd.f32 %v862, %v1602
      %v1604 = vpop.f32.mrf.mxu0
      %v1605 = vadd.f32 %v858, %v1604
      %v1606 = vpop.f32.mrf.mxu0
      %v1607 = vadd.f32 %v862, %v1606
      %1608 = vmatprep.mubr.bf16.mxu0 %v716
      %1609 = vmatmul.mubr.bf16.gmra.mxu0 %v715
      %v1610 = vpop.f32.mrf.mxu0
      %v1611 = vadd.f32 %v858, %v1610
      %v1612 = vpop.f32.mrf.mxu0
      %v1613 = vadd.f32 %v862, %v1612
      %v1614 = vpop.f32.mrf.mxu0
      %v1615 = vadd.f32 %v858, %v1614
      %v1616 = vpop.f32.mrf.mxu0
      %v1617 = vadd.f32 %v862, %v1616
      %1618 = vmatprep.mubr.bf16.mxu0 %v718
      %1619 = vmatmul.mubr.bf16.gmra.mxu0 %v717
      %v1620 = vpop.f32.mrf.mxu0
      %v1621 = vadd.f32 %v858, %v1620
      %v1622 = vpop.f32.mrf.mxu0
      %v1623 = vadd.f32 %v862, %v1622
      %v1624 = vpop.f32.mrf.mxu0
      %v1625 = vadd.f32 %v858, %v1624
      %v1626 = vpop.f32.mrf.mxu0
      %v1627 = vadd.f32 %v862, %v1626
      %1628 = vmatprep.mubr.bf16.mxu0 %v720
      %1629 = vmatmul.mubr.bf16.gmra.mxu0 %v719
      %v1630 = vpop.f32.mrf.mxu0
      %v1631 = vadd.f32 %v858, %v1630
      %v1632 = vpop.f32.mrf.mxu0
      %v1633 = vadd.f32 %v862, %v1632
      %v1634 = vpop.f32.mrf.mxu0
      %v1635 = vadd.f32 %v858, %v1634
      %v1636 = vpop.f32.mrf.mxu0
      %v1637 = vadd.f32 %v862, %v1636
      %1638 = vmatprep.mubr.bf16.mxu0 %v722
      %1639 = vmatmul.mubr.bf16.gmra.mxu0 %v721
      %v1640 = vpop.f32.mrf.mxu0
      %v1641 = vadd.f32 %v858, %v1640
      %v1642 = vpop.f32.mrf.mxu0
      %v1643 = vadd.f32 %v862, %v1642
      %v1644 = vpop.f32.mrf.mxu0
      %v1645 = vadd.f32 %v858, %v1644
      %v1646 = vpop.f32.mrf.mxu0
      %v1647 = vadd.f32 %v862, %v1646
      %1648 = vmatprep.mubr.bf16.mxu0 %v724
      %1649 = vmatmul.mubr.bf16.gmra.mxu0 %v723
      %v1650 = vpop.f32.mrf.mxu0
      %v1651 = vadd.f32 %v858, %v1650
      %v1652 = vpop.f32.mrf.mxu0
      %v1653 = vadd.f32 %v862, %v1652
      %v1654 = vpop.f32.mrf.mxu0
      %v1655 = vadd.f32 %v858, %v1654
      %v1656 = vpop.f32.mrf.mxu0
      %v1657 = vadd.f32 %v862, %v1656
      %1658 = vdwg.mxu0
      %1659 = vmatprep.subr.bf16.mxu0 %v1294
      %1660 = vmatpush1.bf16.msra.mxu0 %v1293
      %1661 = vmatprep.subr.bf16.mxu0 %v1287
      %1662 = vmatpush1.bf16.msra.mxu0 %v1286
      %1663 = vmatprep.subr.bf16.mxu0 %v1280
      %1664 = vmatpush1.bf16.msra.mxu0 %v1279
      %1665 = vmatprep.subr.bf16.mxu0 %v1273
      %1666 = vmatpush1.bf16.msra.mxu0 %v1272
      %1667 = vmatprep.subr.bf16.mxu0 %v1266
      %1668 = vmatpush1.bf16.msra.mxu0 %v1265
      %1669 = vmatprep.subr.bf16.mxu0 %v1259
      %1670 = vmatpush1.bf16.msra.mxu0 %v1258
      %1671 = vmatprep.subr.bf16.mxu0 %v1252
      %1672 = vmatpush1.bf16.msra.mxu0 %v1251
      %1673 = vmatprep.subr.bf16.mxu0 %v1245
      %1674 = vmatpush1.bf16.msra.mxu0 %v1244
      %1675 = vmatprep.subr.bf16.mxu0 %v1350
      %1676 = vmatpush2.bf16.msra.mxu0 %v1349
      %1677 = vmatprep.subr.bf16.mxu0 %v1343
      %1678 = vmatpush2.bf16.msra.mxu0 %v1342
      %1679 = vmatprep.subr.bf16.mxu0 %v1336
      %1680 = vmatpush2.bf16.msra.mxu0 %v1335
      %1681 = vmatprep.subr.bf16.mxu0 %v1329
      %1682 = vmatpush2.bf16.msra.mxu0 %v1328
      %1683 = vmatprep.subr.bf16.mxu0 %v1322
      %1684 = vmatpush2.bf16.msra.mxu0 %v1321
      %1685 = vmatprep.subr.bf16.mxu0 %v1315
      %1686 = vmatpush2.bf16.msra.mxu0 %v1314
      %1687 = vmatprep.subr.bf16.mxu0 %v1308
      %1688 = vmatpush2.bf16.msra.mxu0 %v1307
      %1689 = vmatprep.subr.bf16.mxu0 %v1301
      %1690 = vmatpush2.bf16.msra.mxu0 %v1300
      %1691 = vmatprep.mubr.bf16.mxu0 %v694
      %1692 = vmatmul.mubr.bf16.gmra.mxu0 %v693
      %v1693 = vpop.f32.mrf.mxu0
      %v1694 = vadd.f32 %v866, %v1693
      %v1695 = vpop.f32.mrf.mxu0
      %v1696 = vadd.f32 %v870, %v1695
      %v1697 = vpop.f32.mrf.mxu0
      %v1698 = vadd.f32 %v866, %v1697
      %v1699 = vpop.f32.mrf.mxu0
      %v1700 = vadd.f32 %v870, %v1699
      %1701 = vmatprep.mubr.bf16.mxu0 %v696
      %1702 = vmatmul.mubr.bf16.gmra.mxu0 %v695
      %v1703 = vpop.f32.mrf.mxu0
      %v1704 = vadd.f32 %v866, %v1703
      %v1705 = vpop.f32.mrf.mxu0
      %v1706 = vadd.f32 %v870, %v1705
      %v1707 = vpop.f32.mrf.mxu0
      %v1708 = vadd.f32 %v866, %v1707
      %v1709 = vpop.f32.mrf.mxu0
      %v1710 = vadd.f32 %v870, %v1709
      %1711 = vmatprep.mubr.bf16.mxu0 %v698
      %1712 = vmatmul.mubr.bf16.gmra.mxu0 %v697
      %v1713 = vpop.f32.mrf.mxu0
      %v1714 = vadd.f32 %v866, %v1713
      %v1715 = vpop.f32.mrf.mxu0
      %v1716 = vadd.f32 %v870, %v1715
      %v1717 = vpop.f32.mrf.mxu0
      %v1718 = vadd.f32 %v866, %v1717
      %v1719 = vpop.f32.mrf.mxu0
      %v1720 = vadd.f32 %v870, %v1719
      %1721 = vmatprep.mubr.bf16.mxu0 %v700
      %1722 = vmatmul.mubr.bf16.gmra.mxu0 %v699
      %v1723 = vpop.f32.mrf.mxu0
      %v1724 = vadd.f32 %v866, %v1723
      %v1725 = vpop.f32.mrf.mxu0
      %v1726 = vadd.f32 %v870, %v1725
      %v1727 = vpop.f32.mrf.mxu0
      %v1728 = vadd.f32 %v866, %v1727
      %v1729 = vpop.f32.mrf.mxu0
      %v1730 = vadd.f32 %v870, %v1729
      %1731 = vmatprep.mubr.bf16.mxu0 %v702
      %1732 = vmatmul.mubr.bf16.gmra.mxu0 %v701
      %v1733 = vpop.f32.mrf.mxu0
      %v1734 = vadd.f32 %v866, %v1733
      %v1735 = vpop.f32.mrf.mxu0
      %v1736 = vadd.f32 %v870, %v1735
      %v1737 = vpop.f32.mrf.mxu0
      %v1738 = vadd.f32 %v866, %v1737
      %v1739 = vpop.f32.mrf.mxu0
      %v1740 = vadd.f32 %v870, %v1739
      %1741 = vmatprep.mubr.bf16.mxu0 %v704
      %1742 = vmatmul.mubr.bf16.gmra.mxu0 %v703
      %v1743 = vpop.f32.mrf.mxu0
      %v1744 = vadd.f32 %v866, %v1743
      %v1745 = vpop.f32.mrf.mxu0
      %v1746 = vadd.f32 %v870, %v1745
      %v1747 = vpop.f32.mrf.mxu0
      %v1748 = vadd.f32 %v866, %v1747
      %v1749 = vpop.f32.mrf.mxu0
      %v1750 = vadd.f32 %v870, %v1749
      %1751 = vmatprep.mubr.bf16.mxu0 %v706
      %1752 = vmatmul.mubr.bf16.gmra.mxu0 %v705
      %v1753 = vpop.f32.mrf.mxu0
      %v1754 = vadd.f32 %v866, %v1753
      %v1755 = vpop.f32.mrf.mxu0
      %v1756 = vadd.f32 %v870, %v1755
      %v1757 = vpop.f32.mrf.mxu0
      %v1758 = vadd.f32 %v866, %v1757
      %v1759 = vpop.f32.mrf.mxu0
      %v1760 = vadd.f32 %v870, %v1759
      %1761 = vmatprep.mubr.bf16.mxu0 %v708
      %1762 = vmatmul.mubr.bf16.gmra.mxu0 %v707
      %v1763 = vpop.f32.mrf.mxu0
      %v1764 = vadd.f32 %v866, %v1763
      %v1765 = vpop.f32.mrf.mxu0
      %v1766 = vadd.f32 %v870, %v1765
      %v1767 = vpop.f32.mrf.mxu0
      %v1768 = vadd.f32 %v866, %v1767
      %v1769 = vpop.f32.mrf.mxu0
      %v1770 = vadd.f32 %v870, %v1769
      %1771 = vmatprep.mubr.bf16.mxu0 %v710
      %1772 = vmatmul.mubr.bf16.gmra.mxu0 %v709
      %v1773 = vpop.f32.mrf.mxu0
      %v1774 = vadd.f32 %v866, %v1773
      %v1775 = vpop.f32.mrf.mxu0
      %v1776 = vadd.f32 %v870, %v1775
      %v1777 = vpop.f32.mrf.mxu0
      %v1778 = vadd.f32 %v866, %v1777
      %v1779 = vpop.f32.mrf.mxu0
      %v1780 = vadd.f32 %v870, %v1779
      %1781 = vmatprep.mubr.bf16.mxu0 %v712
      %1782 = vmatmul.mubr.bf16.gmra.mxu0 %v711
      %v1783 = vpop.f32.mrf.mxu0
      %v1784 = vadd.f32 %v866, %v1783
      %v1785 = vpop.f32.mrf.mxu0
      %v1786 = vadd.f32 %v870, %v1785
      %v1787 = vpop.f32.mrf.mxu0
      %v1788 = vadd.f32 %v866, %v1787
      %v1789 = vpop.f32.mrf.mxu0
      %v1790 = vadd.f32 %v870, %v1789
      %1791 = vmatprep.mubr.bf16.mxu0 %v714
      %1792 = vmatmul.mubr.bf16.gmra.mxu0 %v713
      %v1793 = vpop.f32.mrf.mxu0
      %v1794 = vadd.f32 %v866, %v1793
      %v1795 = vpop.f32.mrf.mxu0
      %v1796 = vadd.f32 %v870, %v1795
      %v1797 = vpop.f32.mrf.mxu0
      %v1798 = vadd.f32 %v866, %v1797
      %v1799 = vpop.f32.mrf.mxu0
      %v1800 = vadd.f32 %v870, %v1799
      %1801 = vmatprep.mubr.bf16.mxu0 %v716
      %1802 = vmatmul.mubr.bf16.gmra.mxu0 %v715
      %v1803 = vpop.f32.mrf.mxu0
      %v1804 = vadd.f32 %v866, %v1803
      %v1805 = vpop.f32.mrf.mxu0
      %v1806 = vadd.f32 %v870, %v1805
      %v1807 = vpop.f32.mrf.mxu0
      %v1808 = vadd.f32 %v866, %v1807
      %v1809 = vpop.f32.mrf.mxu0
      %v1810 = vadd.f32 %v870, %v1809
      %1811 = vmatprep.mubr.bf16.mxu0 %v718
      %1812 = vmatmul.mubr.bf16.gmra.mxu0 %v717
      %v1813 = vpop.f32.mrf.mxu0
      %v1814 = vadd.f32 %v866, %v1813
      %v1815 = vpop.f32.mrf.mxu0
      %v1816 = vadd.f32 %v870, %v1815
      %v1817 = vpop.f32.mrf.mxu0
      %v1818 = vadd.f32 %v866, %v1817
      %v1819 = vpop.f32.mrf.mxu0
      %v1820 = vadd.f32 %v870, %v1819
      %1821 = vmatprep.mubr.bf16.mxu0 %v720
      %1822 = vmatmul.mubr.bf16.gmra.mxu0 %v719
      %v1823 = vpop.f32.mrf.mxu0
      %v1824 = vadd.f32 %v866, %v1823
      %v1825 = vpop.f32.mrf.mxu0
      %v1826 = vadd.f32 %v870, %v1825
      %v1827 = vpop.f32.mrf.mxu0
      %v1828 = vadd.f32 %v866, %v1827
      %v1829 = vpop.f32.mrf.mxu0
      %v1830 = vadd.f32 %v870, %v1829
      %1831 = vmatprep.mubr.bf16.mxu0 %v722
      %1832 = vmatmul.mubr.bf16.gmra.mxu0 %v721
      %v1833 = vpop.f32.mrf.mxu0
      %v1834 = vadd.f32 %v866, %v1833
      %v1835 = vpop.f32.mrf.mxu0
      %v1836 = vadd.f32 %v870, %v1835
      %v1837 = vpop.f32.mrf.mxu0
      %v1838 = vadd.f32 %v866, %v1837
      %v1839 = vpop.f32.mrf.mxu0
      %v1840 = vadd.f32 %v870, %v1839
      %1841 = vmatprep.mubr.bf16.mxu0 %v724
      %1842 = vmatmul.mubr.bf16.gmra.mxu0 %v723
      %v1843 = vpop.f32.mrf.mxu0
      %v1844 = vadd.f32 %v866, %v1843
      %v1845 = vpop.f32.mrf.mxu0
      %v1846 = vadd.f32 %v870, %v1845
      %v1847 = vpop.f32.mrf.mxu0
      %v1848 = vadd.f32 %v866, %v1847
      %v1849 = vpop.f32.mrf.mxu0
      %v1850 = vadd.f32 %v870, %v1849
      %1851 = vdwg.mxu0
      %1852 = vmatprep.subr.bf16.mxu0 %v1296
      %1853 = vmatpush1.bf16.msra.mxu0 %v1295
      %1854 = vmatprep.subr.bf16.mxu0 %v1289
      %1855 = vmatpush1.bf16.msra.mxu0 %v1288
      %1856 = vmatprep.subr.bf16.mxu0 %v1282
      %1857 = vmatpush1.bf16.msra.mxu0 %v1281
      %1858 = vmatprep.subr.bf16.mxu0 %v1275
      %1859 = vmatpush1.bf16.msra.mxu0 %v1274
      %1860 = vmatprep.subr.bf16.mxu0 %v1268
      %1861 = vmatpush1.bf16.msra.mxu0 %v1267
      %1862 = vmatprep.subr.bf16.mxu0 %v1261
      %1863 = vmatpush1.bf16.msra.mxu0 %v1260
      %1864 = vmatprep.subr.bf16.mxu0 %v1254
      %1865 = vmatpush1.bf16.msra.mxu0 %v1253
      %1866 = vmatprep.subr.bf16.mxu0 %v1247
      %1867 = vmatpush1.bf16.msra.mxu0 %v1246
      %1868 = vmatprep.subr.bf16.mxu0 %v1352
      %1869 = vmatpush2.bf16.msra.mxu0 %v1351
      %1870 = vmatprep.subr.bf16.mxu0 %v1345
      %1871 = vmatpush2.bf16.msra.mxu0 %v1344
      %1872 = vmatprep.subr.bf16.mxu0 %v1338
      %1873 = vmatpush2.bf16.msra.mxu0 %v1337
      %1874 = vmatprep.subr.bf16.mxu0 %v1331
      %1875 = vmatpush2.bf16.msra.mxu0 %v1330
      %1876 = vmatprep.subr.bf16.mxu0 %v1324
      %1877 = vmatpush2.bf16.msra.mxu0 %v1323
      %1878 = vmatprep.subr.bf16.mxu0 %v1317
      %1879 = vmatpush2.bf16.msra.mxu0 %v1316
      %1880 = vmatprep.subr.bf16.mxu0 %v1310
      %1881 = vmatpush2.bf16.msra.mxu0 %v1309
      %1882 = vmatprep.subr.bf16.mxu0 %v1303
      %1883 = vmatpush2.bf16.msra.mxu0 %v1302
      %1884 = vmatprep.mubr.bf16.mxu0 %v694
      %1885 = vmatmul.mubr.bf16.gmra.mxu0 %v693
      %v1886 = vpop.f32.mrf.mxu0
      %v1887 = vadd.f32 %v874, %v1886
      %v1888 = vpop.f32.mrf.mxu0
      %v1889 = vadd.f32 %v878, %v1888
      %v1890 = vpop.f32.mrf.mxu0
      %v1891 = vadd.f32 %v874, %v1890
      %v1892 = vpop.f32.mrf.mxu0
      %v1893 = vadd.f32 %v878, %v1892
      %1894 = vmatprep.mubr.bf16.mxu0 %v696
      %1895 = vmatmul.mubr.bf16.gmra.mxu0 %v695
      %v1896 = vpop.f32.mrf.mxu0
      %v1897 = vadd.f32 %v874, %v1896
      %v1898 = vpop.f32.mrf.mxu0
      %v1899 = vadd.f32 %v878, %v1898
      %v1900 = vpop.f32.mrf.mxu0
      %v1901 = vadd.f32 %v874, %v1900
      %v1902 = vpop.f32.mrf.mxu0
      %v1903 = vadd.f32 %v878, %v1902
      %1904 = vmatprep.mubr.bf16.mxu0 %v698
      %1905 = vmatmul.mubr.bf16.gmra.mxu0 %v697
      %v1906 = vpop.f32.mrf.mxu0
      %v1907 = vadd.f32 %v874, %v1906
      %v1908 = vpop.f32.mrf.mxu0
      %v1909 = vadd.f32 %v878, %v1908
      %v1910 = vpop.f32.mrf.mxu0
      %v1911 = vadd.f32 %v874, %v1910
      %v1912 = vpop.f32.mrf.mxu0
      %v1913 = vadd.f32 %v878, %v1912
      %1914 = vmatprep.mubr.bf16.mxu0 %v700
      %1915 = vmatmul.mubr.bf16.gmra.mxu0 %v699
      %v1916 = vpop.f32.mrf.mxu0
      %v1917 = vadd.f32 %v874, %v1916
      %v1918 = vpop.f32.mrf.mxu0
      %v1919 = vadd.f32 %v878, %v1918
      %v1920 = vpop.f32.mrf.mxu0
      %v1921 = vadd.f32 %v874, %v1920
      %v1922 = vpop.f32.mrf.mxu0
      %v1923 = vadd.f32 %v878, %v1922
      %1924 = vmatprep.mubr.bf16.mxu0 %v702
      %1925 = vmatmul.mubr.bf16.gmra.mxu0 %v701
      %v1926 = vpop.f32.mrf.mxu0
      %v1927 = vadd.f32 %v874, %v1926
      %v1928 = vpop.f32.mrf.mxu0
      %v1929 = vadd.f32 %v878, %v1928
      %v1930 = vpop.f32.mrf.mxu0
      %v1931 = vadd.f32 %v874, %v1930
      %v1932 = vpop.f32.mrf.mxu0
      %v1933 = vadd.f32 %v878, %v1932
      %1934 = vmatprep.mubr.bf16.mxu0 %v704
      %1935 = vmatmul.mubr.bf16.gmra.mxu0 %v703
      %v1936 = vpop.f32.mrf.mxu0
      %v1937 = vadd.f32 %v874, %v1936
      %v1938 = vpop.f32.mrf.mxu0
      %v1939 = vadd.f32 %v878, %v1938
      %v1940 = vpop.f32.mrf.mxu0
      %v1941 = vadd.f32 %v874, %v1940
      %v1942 = vpop.f32.mrf.mxu0
      %v1943 = vadd.f32 %v878, %v1942
      %1944 = vmatprep.mubr.bf16.mxu0 %v706
      %1945 = vmatmul.mubr.bf16.gmra.mxu0 %v705
      %v1946 = vpop.f32.mrf.mxu0
      %v1947 = vadd.f32 %v874, %v1946
      %v1948 = vpop.f32.mrf.mxu0
      %v1949 = vadd.f32 %v878, %v1948
      %v1950 = vpop.f32.mrf.mxu0
      %v1951 = vadd.f32 %v874, %v1950
      %v1952 = vpop.f32.mrf.mxu0
      %v1953 = vadd.f32 %v878, %v1952
      %1954 = vmatprep.mubr.bf16.mxu0 %v708
      %1955 = vmatmul.mubr.bf16.gmra.mxu0 %v707
      %v1956 = vpop.f32.mrf.mxu0
      %v1957 = vadd.f32 %v874, %v1956
      %v1958 = vpop.f32.mrf.mxu0
      %v1959 = vadd.f32 %v878, %v1958
      %v1960 = vpop.f32.mrf.mxu0
      %v1961 = vadd.f32 %v874, %v1960
      %v1962 = vpop.f32.mrf.mxu0
      %v1963 = vadd.f32 %v878, %v1962
      %1964 = vmatprep.mubr.bf16.mxu0 %v710
      %1965 = vmatmul.mubr.bf16.gmra.mxu0 %v709
      %v1966 = vpop.f32.mrf.mxu0
      %v1967 = vadd.f32 %v874, %v1966
      %v1968 = vpop.f32.mrf.mxu0
      %v1969 = vadd.f32 %v878, %v1968
      %v1970 = vpop.f32.mrf.mxu0
      %v1971 = vadd.f32 %v874, %v1970
      %v1972 = vpop.f32.mrf.mxu0
      %v1973 = vadd.f32 %v878, %v1972
      %1974 = vmatprep.mubr.bf16.mxu0 %v712
      %1975 = vmatmul.mubr.bf16.gmra.mxu0 %v711
      %v1976 = vpop.f32.mrf.mxu0
      %v1977 = vadd.f32 %v874, %v1976
      %v1978 = vpop.f32.mrf.mxu0
      %v1979 = vadd.f32 %v878, %v1978
      %v1980 = vpop.f32.mrf.mxu0
      %v1981 = vadd.f32 %v874, %v1980
      %v1982 = vpop.f32.mrf.mxu0
      %v1983 = vadd.f32 %v878, %v1982
      %1984 = vmatprep.mubr.bf16.mxu0 %v714
      %1985 = vmatmul.mubr.bf16.gmra.mxu0 %v713
      %v1986 = vpop.f32.mrf.mxu0
      %v1987 = vadd.f32 %v874, %v1986
      %v1988 = vpop.f32.mrf.mxu0
      %v1989 = vadd.f32 %v878, %v1988
      %v1990 = vpop.f32.mrf.mxu0
      %v1991 = vadd.f32 %v874, %v1990
      %v1992 = vpop.f32.mrf.mxu0
      %v1993 = vadd.f32 %v878, %v1992
      %1994 = vmatprep.mubr.bf16.mxu0 %v716
      %1995 = vmatmul.mubr.bf16.gmra.mxu0 %v715
      %v1996 = vpop.f32.mrf.mxu0
      %v1997 = vadd.f32 %v874, %v1996
      %v1998 = vpop.f32.mrf.mxu0
      %v1999 = vadd.f32 %v878, %v1998
      %v2000 = vpop.f32.mrf.mxu0
      %v2001 = vadd.f32 %v874, %v2000
      %v2002 = vpop.f32.mrf.mxu0
      %v2003 = vadd.f32 %v878, %v2002
      %2004 = vmatprep.mubr.bf16.mxu0 %v718
      %2005 = vmatmul.mubr.bf16.gmra.mxu0 %v717
      %v2006 = vpop.f32.mrf.mxu0
      %v2007 = vadd.f32 %v874, %v2006
      %v2008 = vpop.f32.mrf.mxu0
      %v2009 = vadd.f32 %v878, %v2008
      %v2010 = vpop.f32.mrf.mxu0
      %v2011 = vadd.f32 %v874, %v2010
      %v2012 = vpop.f32.mrf.mxu0
      %v2013 = vadd.f32 %v878, %v2012
      %2014 = vmatprep.mubr.bf16.mxu0 %v720
      %2015 = vmatmul.mubr.bf16.gmra.mxu0 %v719
      %v2016 = vpop.f32.mrf.mxu0
      %v2017 = vadd.f32 %v874, %v2016
      %v2018 = vpop.f32.mrf.mxu0
      %v2019 = vadd.f32 %v878, %v2018
      %v2020 = vpop.f32.mrf.mxu0
      %v2021 = vadd.f32 %v874, %v2020
      %v2022 = vpop.f32.mrf.mxu0
      %v2023 = vadd.f32 %v878, %v2022
      %2024 = vmatprep.mubr.bf16.mxu0 %v722
      %2025 = vmatmul.mubr.bf16.gmra.mxu0 %v721
      %v2026 = vpop.f32.mrf.mxu0
      %v2027 = vadd.f32 %v874, %v2026
      %v2028 = vpop.f32.mrf.mxu0
      %v2029 = vadd.f32 %v878, %v2028
      %v2030 = vpop.f32.mrf.mxu0
      %v2031 = vadd.f32 %v874, %v2030
      %v2032 = vpop.f32.mrf.mxu0
      %v2033 = vadd.f32 %v878, %v2032
      %2034 = vmatprep.mubr.bf16.mxu0 %v724
      %2035 = vmatmul.mubr.bf16.gmra.mxu0 %v723
      %v2036 = vpop.f32.mrf.mxu0
      %v2037 = vadd.f32 %v874, %v2036
      %v2038 = vpop.f32.mrf.mxu0
      %v2039 = vadd.f32 %v878, %v2038
      %v2040 = vpop.f32.mrf.mxu0
      %v2041 = vadd.f32 %v874, %v2040
      %v2042 = vpop.f32.mrf.mxu0
      %v2043 = vadd.f32 %v878, %v2042
      %2044 = vdwg.mxu0
      %2045 = vmatprep.subr.bf16.mxu0 0
      %2046 = vmatpush1.bf16.msra.mxu0 %v1297
      %2047 = vmatprep.subr.bf16.mxu0 0
      %2048 = vmatpush1.bf16.msra.mxu0 %v1290
      %2049 = vmatprep.subr.bf16.mxu0 0
      %2050 = vmatpush1.bf16.msra.mxu0 %v1283
      %2051 = vmatprep.subr.bf16.mxu0 0
      %2052 = vmatpush1.bf16.msra.mxu0 %v1276
      %2053 = vmatprep.subr.bf16.mxu0 0
      %2054 = vmatpush1.bf16.msra.mxu0 %v1269
      %2055 = vmatprep.subr.bf16.mxu0 0
      %2056 = vmatpush1.bf16.msra.mxu0 %v1262
      %2057 = vmatprep.subr.bf16.mxu0 0
      %2058 = vmatpush1.bf16.msra.mxu0 %v1255
      %2059 = vmatprep.subr.bf16.mxu0 0
      %2060 = vmatpush1.bf16.msra.mxu0 %v1248
      %2061 = vmatprep.subr.bf16.mxu0 0
      %2062 = vmatpush2.bf16.msra.mxu0 %v1353
      %2063 = vmatprep.subr.bf16.mxu0 0
      %2064 = vmatpush2.bf16.msra.mxu0 %v1346
      %2065 = vmatprep.subr.bf16.mxu0 0
      %2066 = vmatpush2.bf16.msra.mxu0 %v1339
      %2067 = vmatprep.subr.bf16.mxu0 0
      %2068 = vmatpush2.bf16.msra.mxu0 %v1332
      %2069 = vmatprep.subr.bf16.mxu0 0
      %2070 = vmatpush2.bf16.msra.mxu0 %v1325
      %2071 = vmatprep.subr.bf16.mxu0 0
      %2072 = vmatpush2.bf16.msra.mxu0 %v1318
      %2073 = vmatprep.subr.bf16.mxu0 0
      %2074 = vmatpush2.bf16.msra.mxu0 %v1311
      %2075 = vmatprep.subr.bf16.mxu0 0
      %2076 = vmatpush2.bf16.msra.mxu0 %v1304
      %2077 = vmatprep.mubr.bf16.mxu0 %v694
      %2078 = vmatmul.mubr.bf16.gmra.mxu0 %v693
      %v2079 = vpop.f32.mrf.mxu0
      %v2080 = vadd.f32 %v882, %v2079
      %v2081 = vpop.f32.mrf.mxu0
      %v2082 = vpop.f32.mrf.mxu0
      %v2083 = vadd.f32 %v882, %v2082
      %v2084 = vpop.f32.mrf.mxu0
      %2085 = vmatprep.mubr.bf16.mxu0 %v696
      %2086 = vmatmul.mubr.bf16.gmra.mxu0 %v695
      %v2087 = vpop.f32.mrf.mxu0
      %v2088 = vadd.f32 %v882, %v2087
      %v2089 = vpop.f32.mrf.mxu0
      %v2090 = vpop.f32.mrf.mxu0
      %v2091 = vadd.f32 %v882, %v2090
      %v2092 = vpop.f32.mrf.mxu0
      %2093 = vmatprep.mubr.bf16.mxu0 %v698
      %2094 = vmatmul.mubr.bf16.gmra.mxu0 %v697
      %v2095 = vpop.f32.mrf.mxu0
      %v2096 = vadd.f32 %v882, %v2095
      %v2097 = vpop.f32.mrf.mxu0
      %v2098 = vpop.f32.mrf.mxu0
      %v2099 = vadd.f32 %v882, %v2098
      %v2100 = vpop.f32.mrf.mxu0
      %2101 = vmatprep.mubr.bf16.mxu0 %v700
      %2102 = vmatmul.mubr.bf16.gmra.mxu0 %v699
      %v2103 = vpop.f32.mrf.mxu0
      %v2104 = vadd.f32 %v882, %v2103
      %v2105 = vpop.f32.mrf.mxu0
      %v2106 = vpop.f32.mrf.mxu0
      %v2107 = vadd.f32 %v882, %v2106
      %v2108 = vpop.f32.mrf.mxu0
      %2109 = vmatprep.mubr.bf16.mxu0 %v702
      %2110 = vmatmul.mubr.bf16.gmra.mxu0 %v701
      %v2111 = vpop.f32.mrf.mxu0
      %v2112 = vadd.f32 %v882, %v2111
      %v2113 = vpop.f32.mrf.mxu0
      %v2114 = vpop.f32.mrf.mxu0
      %v2115 = vadd.f32 %v882, %v2114
      %v2116 = vpop.f32.mrf.mxu0
      %2117 = vmatprep.mubr.bf16.mxu0 %v704
      %2118 = vmatmul.mubr.bf16.gmra.mxu0 %v703
      %v2119 = vpop.f32.mrf.mxu0
      %v2120 = vadd.f32 %v882, %v2119
      %v2121 = vpop.f32.mrf.mxu0
      %v2122 = vpop.f32.mrf.mxu0
      %v2123 = vadd.f32 %v882, %v2122
      %v2124 = vpop.f32.mrf.mxu0
      %2125 = vmatprep.mubr.bf16.mxu0 %v706
      %2126 = vmatmul.mubr.bf16.gmra.mxu0 %v705
      %v2127 = vpop.f32.mrf.mxu0
      %v2128 = vadd.f32 %v882, %v2127
      %v2129 = vpop.f32.mrf.mxu0
      %v2130 = vpop.f32.mrf.mxu0
      %v2131 = vadd.f32 %v882, %v2130
      %v2132 = vpop.f32.mrf.mxu0
      %2133 = vmatprep.mubr.bf16.mxu0 %v708
      %2134 = vmatmul.mubr.bf16.gmra.mxu0 %v707
      %v2135 = vpop.f32.mrf.mxu0
      %v2136 = vadd.f32 %v882, %v2135
      %v2137 = vpop.f32.mrf.mxu0
      %v2138 = vpop.f32.mrf.mxu0
      %v2139 = vadd.f32 %v882, %v2138
      %v2140 = vpop.f32.mrf.mxu0
      %2141 = vmatprep.mubr.bf16.mxu0 %v710
      %2142 = vmatmul.mubr.bf16.gmra.mxu0 %v709
      %v2143 = vpop.f32.mrf.mxu0
      %v2144 = vadd.f32 %v882, %v2143
      %v2145 = vpop.f32.mrf.mxu0
      %v2146 = vpop.f32.mrf.mxu0
      %v2147 = vadd.f32 %v882, %v2146
      %v2148 = vpop.f32.mrf.mxu0
      %2149 = vmatprep.mubr.bf16.mxu0 %v712
      %2150 = vmatmul.mubr.bf16.gmra.mxu0 %v711
      %v2151 = vpop.f32.mrf.mxu0
      %v2152 = vadd.f32 %v882, %v2151
      %v2153 = vpop.f32.mrf.mxu0
      %v2154 = vpop.f32.mrf.mxu0
      %v2155 = vadd.f32 %v882, %v2154
      %v2156 = vpop.f32.mrf.mxu0
      %2157 = vmatprep.mubr.bf16.mxu0 %v714
      %2158 = vmatmul.mubr.bf16.gmra.mxu0 %v713
      %v2159 = vpop.f32.mrf.mxu0
      %v2160 = vadd.f32 %v882, %v2159
      %v2161 = vpop.f32.mrf.mxu0
      %v2162 = vpop.f32.mrf.mxu0
      %v2163 = vadd.f32 %v882, %v2162
      %v2164 = vpop.f32.mrf.mxu0
      %2165 = vmatprep.mubr.bf16.mxu0 %v716
      %2166 = vmatmul.mubr.bf16.gmra.mxu0 %v715
      %v2167 = vpop.f32.mrf.mxu0
      %v2168 = vadd.f32 %v882, %v2167
      %v2169 = vpop.f32.mrf.mxu0
      %v2170 = vpop.f32.mrf.mxu0
      %v2171 = vadd.f32 %v882, %v2170
      %v2172 = vpop.f32.mrf.mxu0
      %2173 = vmatprep.mubr.bf16.mxu0 %v718
      %2174 = vmatmul.mubr.bf16.gmra.mxu0 %v717
      %v2175 = vpop.f32.mrf.mxu0
      %v2176 = vadd.f32 %v882, %v2175
      %v2177 = vpop.f32.mrf.mxu0
      %v2178 = vpop.f32.mrf.mxu0
      %v2179 = vadd.f32 %v882, %v2178
      %v2180 = vpop.f32.mrf.mxu0
      %2181 = vmatprep.mubr.bf16.mxu0 %v720
      %2182 = vmatmul.mubr.bf16.gmra.mxu0 %v719
      %v2183 = vpop.f32.mrf.mxu0
      %v2184 = vadd.f32 %v882, %v2183
      %v2185 = vpop.f32.mrf.mxu0
      %v2186 = vpop.f32.mrf.mxu0
      %v2187 = vadd.f32 %v882, %v2186
      %v2188 = vpop.f32.mrf.mxu0
      %2189 = vmatprep.mubr.bf16.mxu0 %v722
      %2190 = vmatmul.mubr.bf16.gmra.mxu0 %v721
      %v2191 = vpop.f32.mrf.mxu0
      %v2192 = vadd.f32 %v882, %v2191
      %v2193 = vpop.f32.mrf.mxu0
      %v2194 = vpop.f32.mrf.mxu0
      %v2195 = vadd.f32 %v882, %v2194
      %v2196 = vpop.f32.mrf.mxu0
      %2197 = vmatprep.mubr.bf16.mxu0 %v724
      %2198 = vmatmul.mubr.bf16.gmra.mxu0 %v723
      %v2199 = vpop.f32.mrf.mxu0
      %v2200 = vadd.f32 %v882, %v2199
      %v2201 = vpop.f32.mrf.mxu0
      %v2202 = vpop.f32.mrf.mxu0
      %v2203 = vadd.f32 %v882, %v2202
      %v2204 = vpop.f32.mrf.mxu0
      %2205 = vdwg.mxu0
      %v2206 = vmax.f32 %v1501, 0.0
      %v2207 = vmax.f32 %v1503, 0.0
      %v2208 = vmax.f32 %v1694, 0.0
      %v2209 = vmax.f32 %v1696, 0.0
      %v2210 = vmax.f32 %v1887, 0.0
      %v2211 = vmax.f32 %v1889, 0.0
      %v2212 = vmax.f32 %v2080, 0.0
      %v2213 = vmax.f32 %v1505, 0.0
      %v2214 = vmax.f32 %v1507, 0.0
      %v2215 = vmax.f32 %v1698, 0.0
      %v2216 = vmax.f32 %v1700, 0.0
      %v2217 = vmax.f32 %v1891, 0.0
      %v2218 = vmax.f32 %v1893, 0.0
      %v2219 = vmax.f32 %v2083, 0.0
      %v2220 = vmax.f32 %v1511, 0.0
      %v2221 = vmax.f32 %v1513, 0.0
      %v2222 = vmax.f32 %v1704, 0.0
      %v2223 = vmax.f32 %v1706, 0.0
      %v2224 = vmax.f32 %v1897, 0.0
      %v2225 = vmax.f32 %v1899, 0.0
      %v2226 = vmax.f32 %v2088, 0.0
      %v2227 = vmax.f32 %v1515, 0.0
      %v2228 = vmax.f32 %v1517, 0.0
      %v2229 = vmax.f32 %v1708, 0.0
      %v2230 = vmax.f32 %v1710, 0.0
      %v2231 = vmax.f32 %v1901, 0.0
      %v2232 = vmax.f32 %v1903, 0.0
      %v2233 = vmax.f32 %v2091, 0.0
      %v2234 = vmax.f32 %v1521, 0.0
      %v2235 = vmax.f32 %v1523, 0.0
      %v2236 = vmax.f32 %v1714, 0.0
      %v2237 = vmax.f32 %v1716, 0.0
      %v2238 = vmax.f32 %v1907, 0.0
      %v2239 = vmax.f32 %v1909, 0.0
      %v2240 = vmax.f32 %v2096, 0.0
      %v2241 = vmax.f32 %v1525, 0.0
      %v2242 = vmax.f32 %v1527, 0.0
      %v2243 = vmax.f32 %v1718, 0.0
      %v2244 = vmax.f32 %v1720, 0.0
      %v2245 = vmax.f32 %v1911, 0.0
      %v2246 = vmax.f32 %v1913, 0.0
      %v2247 = vmax.f32 %v2099, 0.0
      %v2248 = vmax.f32 %v1531, 0.0
      %v2249 = vmax.f32 %v1533, 0.0
      %v2250 = vmax.f32 %v1724, 0.0
      %v2251 = vmax.f32 %v1726, 0.0
      %v2252 = vmax.f32 %v1917, 0.0
      %v2253 = vmax.f32 %v1919, 0.0
      %v2254 = vmax.f32 %v2104, 0.0
      %v2255 = vmax.f32 %v1535, 0.0
      %v2256 = vmax.f32 %v1537, 0.0
      %v2257 = vmax.f32 %v1728, 0.0
      %v2258 = vmax.f32 %v1730, 0.0
      %v2259 = vmax.f32 %v1921, 0.0
      %v2260 = vmax.f32 %v1923, 0.0
      %v2261 = vmax.f32 %v2107, 0.0
      %v2262 = vmax.f32 %v1541, 0.0
      %v2263 = vmax.f32 %v1543, 0.0
      %v2264 = vmax.f32 %v1734, 0.0
      %v2265 = vmax.f32 %v1736, 0.0
      %v2266 = vmax.f32 %v1927, 0.0
      %v2267 = vmax.f32 %v1929, 0.0
      %v2268 = vmax.f32 %v2112, 0.0
      %v2269 = vmax.f32 %v1545, 0.0
      %v2270 = vmax.f32 %v1547, 0.0
      %v2271 = vmax.f32 %v1738, 0.0
      %v2272 = vmax.f32 %v1740, 0.0
      %v2273 = vmax.f32 %v1931, 0.0
      %v2274 = vmax.f32 %v1933, 0.0
      %v2275 = vmax.f32 %v2115, 0.0
      %v2276 = vmax.f32 %v1551, 0.0
      %v2277 = vmax.f32 %v1553, 0.0
      %v2278 = vmax.f32 %v1744, 0.0
      %v2279 = vmax.f32 %v1746, 0.0
      %v2280 = vmax.f32 %v1937, 0.0
      %v2281 = vmax.f32 %v1939, 0.0
      %v2282 = vmax.f32 %v2120, 0.0
      %v2283 = vmax.f32 %v1555, 0.0
      %v2284 = vmax.f32 %v1557, 0.0
      %v2285 = vmax.f32 %v1748, 0.0
      %v2286 = vmax.f32 %v1750, 0.0
      %v2287 = vmax.f32 %v1941, 0.0
      %v2288 = vmax.f32 %v1943, 0.0
      %v2289 = vmax.f32 %v2123, 0.0
      %v2290 = vmax.f32 %v1561, 0.0
      %v2291 = vmax.f32 %v1563, 0.0
      %v2292 = vmax.f32 %v1754, 0.0
      %v2293 = vmax.f32 %v1756, 0.0
      %v2294 = vmax.f32 %v1947, 0.0
      %v2295 = vmax.f32 %v1949, 0.0
      %v2296 = vmax.f32 %v2128, 0.0
      %v2297 = vmax.f32 %v1565, 0.0
      %v2298 = vmax.f32 %v1567, 0.0
      %v2299 = vmax.f32 %v1758, 0.0
      %v2300 = vmax.f32 %v1760, 0.0
      %v2301 = vmax.f32 %v1951, 0.0
      %v2302 = vmax.f32 %v1953, 0.0
      %v2303 = vmax.f32 %v2131, 0.0
      %v2304 = vmax.f32 %v1571, 0.0
      %v2305 = vmax.f32 %v1573, 0.0
      %v2306 = vmax.f32 %v1764, 0.0
      %v2307 = vmax.f32 %v1766, 0.0
      %v2308 = vmax.f32 %v1957, 0.0
      %v2309 = vmax.f32 %v1959, 0.0
      %v2310 = vmax.f32 %v2136, 0.0
      %v2311 = vmax.f32 %v1575, 0.0
      %v2312 = vmax.f32 %v1577, 0.0
      %v2313 = vmax.f32 %v1768, 0.0
      %v2314 = vmax.f32 %v1770, 0.0
      %v2315 = vmax.f32 %v1961, 0.0
      %v2316 = vmax.f32 %v1963, 0.0
      %v2317 = vmax.f32 %v2139, 0.0
      %v2318 = vmax.f32 %v1581, 0.0
      %v2319 = vmax.f32 %v1583, 0.0
      %v2320 = vmax.f32 %v1774, 0.0
      %v2321 = vmax.f32 %v1776, 0.0
      %v2322 = vmax.f32 %v1967, 0.0
      %v2323 = vmax.f32 %v1969, 0.0
      %v2324 = vmax.f32 %v2144, 0.0
      %v2325 = vmax.f32 %v1585, 0.0
      %v2326 = vmax.f32 %v1587, 0.0
      %v2327 = vmax.f32 %v1778, 0.0
      %v2328 = vmax.f32 %v1780, 0.0
      %v2329 = vmax.f32 %v1971, 0.0
      %v2330 = vmax.f32 %v1973, 0.0
      %v2331 = vmax.f32 %v2147, 0.0
      %v2332 = vmax.f32 %v1591, 0.0
      %v2333 = vmax.f32 %v1593, 0.0
      %v2334 = vmax.f32 %v1784, 0.0
      %v2335 = vmax.f32 %v1786, 0.0
      %v2336 = vmax.f32 %v1977, 0.0
      %v2337 = vmax.f32 %v1979, 0.0
      %v2338 = vmax.f32 %v2152, 0.0
      %v2339 = vmax.f32 %v1595, 0.0
      %v2340 = vmax.f32 %v1597, 0.0
      %v2341 = vmax.f32 %v1788, 0.0
      %v2342 = vmax.f32 %v1790, 0.0
      %v2343 = vmax.f32 %v1981, 0.0
      %v2344 = vmax.f32 %v1983, 0.0
      %v2345 = vmax.f32 %v2155, 0.0
      %v2346 = vmax.f32 %v1601, 0.0
      %v2347 = vmax.f32 %v1603, 0.0
      %v2348 = vmax.f32 %v1794, 0.0
      %v2349 = vmax.f32 %v1796, 0.0
      %v2350 = vmax.f32 %v1987, 0.0
      %v2351 = vmax.f32 %v1989, 0.0
      %v2352 = vmax.f32 %v2160, 0.0
      %v2353 = vmax.f32 %v1605, 0.0
      %v2354 = vmax.f32 %v1607, 0.0
      %v2355 = vmax.f32 %v1798, 0.0
      %v2356 = vmax.f32 %v1800, 0.0
      %v2357 = vmax.f32 %v1991, 0.0
      %v2358 = vmax.f32 %v1993, 0.0
      %v2359 = vmax.f32 %v2163, 0.0
      %v2360 = vmax.f32 %v1611, 0.0
      %v2361 = vmax.f32 %v1613, 0.0
      %v2362 = vmax.f32 %v1804, 0.0
      %v2363 = vmax.f32 %v1806, 0.0
      %v2364 = vmax.f32 %v1997, 0.0
      %v2365 = vmax.f32 %v1999, 0.0
      %v2366 = vmax.f32 %v2168, 0.0
      %v2367 = vmax.f32 %v1615, 0.0
      %v2368 = vmax.f32 %v1617, 0.0
      %v2369 = vmax.f32 %v1808, 0.0
      %v2370 = vmax.f32 %v1810, 0.0
      %v2371 = vmax.f32 %v2001, 0.0
      %v2372 = vmax.f32 %v2003, 0.0
      %v2373 = vmax.f32 %v2171, 0.0
      %v2374 = vmax.f32 %v1621, 0.0
      %v2375 = vmax.f32 %v1623, 0.0
      %v2376 = vmax.f32 %v1814, 0.0
      %v2377 = vmax.f32 %v1816, 0.0
      %v2378 = vmax.f32 %v2007, 0.0
      %v2379 = vmax.f32 %v2009, 0.0
      %v2380 = vmax.f32 %v2176, 0.0
      %v2381 = vmax.f32 %v1625, 0.0
      %v2382 = vmax.f32 %v1627, 0.0
      %v2383 = vmax.f32 %v1818, 0.0
      %v2384 = vmax.f32 %v1820, 0.0
      %v2385 = vmax.f32 %v2011, 0.0
      %v2386 = vmax.f32 %v2013, 0.0
      %v2387 = vmax.f32 %v2179, 0.0
      %v2388 = vmax.f32 %v1631, 0.0
      %v2389 = vmax.f32 %v1633, 0.0
      %v2390 = vmax.f32 %v1824, 0.0
      %v2391 = vmax.f32 %v1826, 0.0
      %v2392 = vmax.f32 %v2017, 0.0
      %v2393 = vmax.f32 %v2019, 0.0
      %v2394 = vmax.f32 %v2184, 0.0
      %v2395 = vmax.f32 %v1635, 0.0
      %v2396 = vmax.f32 %v1637, 0.0
      %v2397 = vmax.f32 %v1828, 0.0
      %v2398 = vmax.f32 %v1830, 0.0
      %v2399 = vmax.f32 %v2021, 0.0
      %v2400 = vmax.f32 %v2023, 0.0
      %v2401 = vmax.f32 %v2187, 0.0
      %v2402 = vmax.f32 %v1641, 0.0
      %v2403 = vmax.f32 %v1643, 0.0
      %v2404 = vmax.f32 %v1834, 0.0
      %v2405 = vmax.f32 %v1836, 0.0
      %v2406 = vmax.f32 %v2027, 0.0
      %v2407 = vmax.f32 %v2029, 0.0
      %v2408 = vmax.f32 %v2192, 0.0
      %v2409 = vmax.f32 %v1645, 0.0
      %v2410 = vmax.f32 %v1647, 0.0
      %v2411 = vmax.f32 %v1838, 0.0
      %v2412 = vmax.f32 %v1840, 0.0
      %v2413 = vmax.f32 %v2031, 0.0
      %v2414 = vmax.f32 %v2033, 0.0
      %v2415 = vmax.f32 %v2195, 0.0
      %v2416 = vmax.f32 %v1651, 0.0
      %v2417 = vmax.f32 %v1653, 0.0
      %v2418 = vmax.f32 %v1844, 0.0
      %v2419 = vmax.f32 %v1846, 0.0
      %v2420 = vmax.f32 %v2037, 0.0
      %v2421 = vmax.f32 %v2039, 0.0
      %v2422 = vmax.f32 %v2200, 0.0
      %v2423 = vmax.f32 %v1655, 0.0
      %v2424 = vmax.f32 %v1657, 0.0
      %v2425 = vmax.f32 %v1848, 0.0
      %v2426 = vmax.f32 %v1850, 0.0
      %v2427 = vmax.f32 %v2041, 0.0
      %v2428 = vmax.f32 %v2043, 0.0
      %v2429 = vmax.f32 %v2203, 0.0
      %v2430 = vld [vmem:[%s5] sm:$0x7f]
      %v2432 = vlaneseq
      %v2433 = vshrl.u32 %v2432, 7
      %v2434 = vsub.s32 0, %v2433
      %v2435 = vrot.slane %v2430, %v2434
      %v2436 = vlaneseq
      %v2437 = vshrl.u32 %v2436, 7
      %v2438 = vsub.s32 1, %v2437
      %v2439 = vrot.slane %v2430, %v2438
      %v2440 = vlaneseq
      %v2441 = vshrl.u32 %v2440, 7
      %v2442 = vsub.s32 2, %v2441
      %v2443 = vrot.slane %v2430, %v2442
      %v2444 = vlaneseq
      %v2445 = vshrl.u32 %v2444, 7
      %v2446 = vsub.s32 3, %v2445
      %v2447 = vrot.slane %v2430, %v2446
      %v2448 = vlaneseq
      %v2449 = vshrl.u32 %v2448, 7
      %v2450 = vsub.s32 4, %v2449
      %v2451 = vrot.slane %v2430, %v2450
      %v2452 = vlaneseq
      %v2453 = vshrl.u32 %v2452, 7
      %v2454 = vsub.s32 5, %v2453
      %v2455 = vrot.slane %v2430, %v2454
      %v2456 = vlaneseq
      %v2457 = vshrl.u32 %v2456, 7
      %v2458 = vsub.s32 6, %v2457
      %v2459 = vrot.slane %v2430, %v2458
      %v2467 = vmul.f32 %v2206, %v2435
      %v2468 = vmul.f32 %v2207, %v2439
      %v2469 = vmul.f32 %v2208, %v2443
      %v2470 = vmul.f32 %v2209, %v2447
      %v2471 = vmul.f32 %v2210, %v2451
      %v2472 = vmul.f32 %v2211, %v2455
      %v2473 = vmul.f32 %v2212, %v2459
      %v2474 = vmul.f32 %v2213, %v2435
      %v2475 = vmul.f32 %v2214, %v2439
      %v2476 = vmul.f32 %v2215, %v2443
      %v2477 = vmul.f32 %v2216, %v2447
      %v2478 = vmul.f32 %v2217, %v2451
      %v2479 = vmul.f32 %v2218, %v2455
      %v2480 = vmul.f32 %v2219, %v2459
      %v2481 = vmul.f32 %v2220, %v2435
      %v2482 = vmul.f32 %v2221, %v2439
      %v2483 = vmul.f32 %v2222, %v2443
      %v2484 = vmul.f32 %v2223, %v2447
      %v2485 = vmul.f32 %v2224, %v2451
      %v2486 = vmul.f32 %v2225, %v2455
      %v2487 = vmul.f32 %v2226, %v2459
      %v2488 = vmul.f32 %v2227, %v2435
      %v2489 = vmul.f32 %v2228, %v2439
      %v2490 = vmul.f32 %v2229, %v2443
      %v2491 = vmul.f32 %v2230, %v2447
      %v2492 = vmul.f32 %v2231, %v2451
      %v2493 = vmul.f32 %v2232, %v2455
      %v2494 = vmul.f32 %v2233, %v2459
      %v2495 = vmul.f32 %v2234, %v2435
      %v2496 = vmul.f32 %v2235, %v2439
      %v2497 = vmul.f32 %v2236, %v2443
      %v2498 = vmul.f32 %v2237, %v2447
      %v2499 = vmul.f32 %v2238, %v2451
      %v2500 = vmul.f32 %v2239, %v2455
      %v2501 = vmul.f32 %v2240, %v2459
      %v2502 = vmul.f32 %v2241, %v2435
      %v2503 = vmul.f32 %v2242, %v2439
      %v2504 = vmul.f32 %v2243, %v2443
      %v2505 = vmul.f32 %v2244, %v2447
      %v2506 = vmul.f32 %v2245, %v2451
      %v2507 = vmul.f32 %v2246, %v2455
      %v2508 = vmul.f32 %v2247, %v2459
      %v2509 = vmul.f32 %v2248, %v2435
      %v2510 = vmul.f32 %v2249, %v2439
      %v2511 = vmul.f32 %v2250, %v2443
      %v2512 = vmul.f32 %v2251, %v2447
      %v2513 = vmul.f32 %v2252, %v2451
      %v2514 = vmul.f32 %v2253, %v2455
      %v2515 = vmul.f32 %v2254, %v2459
      %v2516 = vmul.f32 %v2255, %v2435
      %v2517 = vmul.f32 %v2256, %v2439
      %v2518 = vmul.f32 %v2257, %v2443
      %v2519 = vmul.f32 %v2258, %v2447
      %v2520 = vmul.f32 %v2259, %v2451
      %v2521 = vmul.f32 %v2260, %v2455
      %v2522 = vmul.f32 %v2261, %v2459
      %v2523 = vmul.f32 %v2262, %v2435
      %v2524 = vmul.f32 %v2263, %v2439
      %v2525 = vmul.f32 %v2264, %v2443
      %v2526 = vmul.f32 %v2265, %v2447
      %v2527 = vmul.f32 %v2266, %v2451
      %v2528 = vmul.f32 %v2267, %v2455
      %v2529 = vmul.f32 %v2268, %v2459
      %v2530 = vmul.f32 %v2269, %v2435
      %v2531 = vmul.f32 %v2270, %v2439
      %v2532 = vmul.f32 %v2271, %v2443
      %v2533 = vmul.f32 %v2272, %v2447
      %v2534 = vmul.f32 %v2273, %v2451
      %v2535 = vmul.f32 %v2274, %v2455
      %v2536 = vmul.f32 %v2275, %v2459
      %v2537 = vmul.f32 %v2276, %v2435
      %v2538 = vmul.f32 %v2277, %v2439
      %v2539 = vmul.f32 %v2278, %v2443
      %v2540 = vmul.f32 %v2279, %v2447
      %v2541 = vmul.f32 %v2280, %v2451
      %v2542 = vmul.f32 %v2281, %v2455
      %v2543 = vmul.f32 %v2282, %v2459
      %v2544 = vmul.f32 %v2283, %v2435
      %v2545 = vmul.f32 %v2284, %v2439
      %v2546 = vmul.f32 %v2285, %v2443
      %v2547 = vmul.f32 %v2286, %v2447
      %v2548 = vmul.f32 %v2287, %v2451
      %v2549 = vmul.f32 %v2288, %v2455
      %v2550 = vmul.f32 %v2289, %v2459
      %v2551 = vmul.f32 %v2290, %v2435
      %v2552 = vmul.f32 %v2291, %v2439
      %v2553 = vmul.f32 %v2292, %v2443
      %v2554 = vmul.f32 %v2293, %v2447
      %v2555 = vmul.f32 %v2294, %v2451
      %v2556 = vmul.f32 %v2295, %v2455
      %v2557 = vmul.f32 %v2296, %v2459
      %v2558 = vmul.f32 %v2297, %v2435
      %v2559 = vmul.f32 %v2298, %v2439
      %v2560 = vmul.f32 %v2299, %v2443
      %v2561 = vmul.f32 %v2300, %v2447
      %v2562 = vmul.f32 %v2301, %v2451
      %v2563 = vmul.f32 %v2302, %v2455
      %v2564 = vmul.f32 %v2303, %v2459
      %v2565 = vmul.f32 %v2304, %v2435
      %v2566 = vmul.f32 %v2305, %v2439
      %v2567 = vmul.f32 %v2306, %v2443
      %v2568 = vmul.f32 %v2307, %v2447
      %v2569 = vmul.f32 %v2308, %v2451
      %v2570 = vmul.f32 %v2309, %v2455
      %v2571 = vmul.f32 %v2310, %v2459
      %v2572 = vmul.f32 %v2311, %v2435
      %v2573 = vmul.f32 %v2312, %v2439
      %v2574 = vmul.f32 %v2313, %v2443
      %v2575 = vmul.f32 %v2314, %v2447
      %v2576 = vmul.f32 %v2315, %v2451
      %v2577 = vmul.f32 %v2316, %v2455
      %v2578 = vmul.f32 %v2317, %v2459
      %v2579 = vmul.f32 %v2318, %v2435
      %v2580 = vmul.f32 %v2319, %v2439
      %v2581 = vmul.f32 %v2320, %v2443
      %v2582 = vmul.f32 %v2321, %v2447
      %v2583 = vmul.f32 %v2322, %v2451
      %v2584 = vmul.f32 %v2323, %v2455
      %v2585 = vmul.f32 %v2324, %v2459
      %v2586 = vmul.f32 %v2325, %v2435
      %v2587 = vmul.f32 %v2326, %v2439
      %v2588 = vmul.f32 %v2327, %v2443
      %v2589 = vmul.f32 %v2328, %v2447
      %v2590 = vmul.f32 %v2329, %v2451
      %v2591 = vmul.f32 %v2330, %v2455
      %v2592 = vmul.f32 %v2331, %v2459
      %v2593 = vmul.f32 %v2332, %v2435
      %v2594 = vmul.f32 %v2333, %v2439
      %v2595 = vmul.f32 %v2334, %v2443
      %v2596 = vmul.f32 %v2335, %v2447
      %v2597 = vmul.f32 %v2336, %v2451
      %v2598 = vmul.f32 %v2337, %v2455
      %v2599 = vmul.f32 %v2338, %v2459
      %v2600 = vmul.f32 %v2339, %v2435
      %v2601 = vmul.f32 %v2340, %v2439
      %v2602 = vmul.f32 %v2341, %v2443
      %v2603 = vmul.f32 %v2342, %v2447
      %v2604 = vmul.f32 %v2343, %v2451
      %v2605 = vmul.f32 %v2344, %v2455
      %v2606 = vmul.f32 %v2345, %v2459
      %v2607 = vmul.f32 %v2346, %v2435
      %v2608 = vmul.f32 %v2347, %v2439
      %v2609 = vmul.f32 %v2348, %v2443
      %v2610 = vmul.f32 %v2349, %v2447
      %v2611 = vmul.f32 %v2350, %v2451
      %v2612 = vmul.f32 %v2351, %v2455
      %v2613 = vmul.f32 %v2352, %v2459
      %v2614 = vmul.f32 %v2353, %v2435
      %v2615 = vmul.f32 %v2354, %v2439
      %v2616 = vmul.f32 %v2355, %v2443
      %v2617 = vmul.f32 %v2356, %v2447
      %v2618 = vmul.f32 %v2357, %v2451
      %v2619 = vmul.f32 %v2358, %v2455
      %v2620 = vmul.f32 %v2359, %v2459
      %v2621 = vmul.f32 %v2360, %v2435
      %v2622 = vmul.f32 %v2361, %v2439
      %v2623 = vmul.f32 %v2362, %v2443
      %v2624 = vmul.f32 %v2363, %v2447
      %v2625 = vmul.f32 %v2364, %v2451
      %v2626 = vmul.f32 %v2365, %v2455
      %v2627 = vmul.f32 %v2366, %v2459
      %v2628 = vmul.f32 %v2367, %v2435
      %v2629 = vmul.f32 %v2368, %v2439
      %v2630 = vmul.f32 %v2369, %v2443
      %v2631 = vmul.f32 %v2370, %v2447
      %v2632 = vmul.f32 %v2371, %v2451
      %v2633 = vmul.f32 %v2372, %v2455
      %v2634 = vmul.f32 %v2373, %v2459
      %v2635 = vmul.f32 %v2374, %v2435
      %v2636 = vmul.f32 %v2375, %v2439
      %v2637 = vmul.f32 %v2376, %v2443
      %v2638 = vmul.f32 %v2377, %v2447
      %v2639 = vmul.f32 %v2378, %v2451
      %v2640 = vmul.f32 %v2379, %v2455
      %v2641 = vmul.f32 %v2380, %v2459
      %v2642 = vmul.f32 %v2381, %v2435
      %v2643 = vmul.f32 %v2382, %v2439
      %v2644 = vmul.f32 %v2383, %v2443
      %v2645 = vmul.f32 %v2384, %v2447
      %v2646 = vmul.f32 %v2385, %v2451
      %v2647 = vmul.f32 %v2386, %v2455
      %v2648 = vmul.f32 %v2387, %v2459
      %v2649 = vmul.f32 %v2388, %v2435
      %v2650 = vmul.f32 %v2389, %v2439
      %v2651 = vmul.f32 %v2390, %v2443
      %v2652 = vmul.f32 %v2391, %v2447
      %v2653 = vmul.f32 %v2392, %v2451
      %v2654 = vmul.f32 %v2393, %v2455
      %v2655 = vmul.f32 %v2394, %v2459
      %v2656 = vmul.f32 %v2395, %v2435
      %v2657 = vmul.f32 %v2396, %v2439
      %v2658 = vmul.f32 %v2397, %v2443
      %v2659 = vmul.f32 %v2398, %v2447
      %v2660 = vmul.f32 %v2399, %v2451
      %v2661 = vmul.f32 %v2400, %v2455
      %v2662 = vmul.f32 %v2401, %v2459
      %v2663 = vmul.f32 %v2402, %v2435
      %v2664 = vmul.f32 %v2403, %v2439
      %v2665 = vmul.f32 %v2404, %v2443
      %v2666 = vmul.f32 %v2405, %v2447
      %v2667 = vmul.f32 %v2406, %v2451
      %v2668 = vmul.f32 %v2407, %v2455
      %v2669 = vmul.f32 %v2408, %v2459
      %v2670 = vmul.f32 %v2409, %v2435
      %v2671 = vmul.f32 %v2410, %v2439
      %v2672 = vmul.f32 %v2411, %v2443
      %v2673 = vmul.f32 %v2412, %v2447
      %v2674 = vmul.f32 %v2413, %v2451
      %v2675 = vmul.f32 %v2414, %v2455
      %v2676 = vmul.f32 %v2415, %v2459
      %v2677 = vmul.f32 %v2416, %v2435
      %v2678 = vmul.f32 %v2417, %v2439
      %v2679 = vmul.f32 %v2418, %v2443
      %v2680 = vmul.f32 %v2419, %v2447
      %v2681 = vmul.f32 %v2420, %v2451
      %v2682 = vmul.f32 %v2421, %v2455
      %v2683 = vmul.f32 %v2422, %v2459
      %v2684 = vmul.f32 %v2423, %v2435
      %v2685 = vmul.f32 %v2424, %v2439
      %v2686 = vmul.f32 %v2425, %v2443
      %v2687 = vmul.f32 %v2426, %v2447
      %v2688 = vmul.f32 %v2427, %v2451
      %v2689 = vmul.f32 %v2428, %v2455
      %v2690 = vmul.f32 %v2429, %v2459
      %v2691 = vadd.f32 %v2467, %v2468
      %v2692 = vadd.f32 %v2691, %v2469
      %v2693 = vadd.f32 %v2692, %v2470
      %v2694 = vadd.f32 %v2693, %v2471
      %v2695 = vadd.f32 %v2694, %v2472
      %vm2696 = vcmask 261120
      %v2697 = vsel %vm2696, %v2473, 0.0
      %v2698 = vadd.f32 %v2695, %v2697
      %2699 = vadd.xlane.f32.xlu0 %v2698
      %v2700 = vpop.xlane.xlu0 %2699
      %v2701 = vadd.f32 %v2474, %v2475
      %v2702 = vadd.f32 %v2701, %v2476
      %v2703 = vadd.f32 %v2702, %v2477
      %v2704 = vadd.f32 %v2703, %v2478
      %v2705 = vadd.f32 %v2704, %v2479
      %v2706 = vsel %vm2696, %v2480, 0.0
      %v2707 = vadd.f32 %v2705, %v2706
      %2708 = vadd.xlane.f32.xlu0 %v2707
      %v2709 = vpop.xlane.xlu0 %2708
      %v2710 = vadd.f32 %v2481, %v2482
      %v2711 = vadd.f32 %v2710, %v2483
      %v2712 = vadd.f32 %v2711, %v2484
      %v2713 = vadd.f32 %v2712, %v2485
      %v2714 = vadd.f32 %v2713, %v2486
      %v2715 = vsel %vm2696, %v2487, 0.0
      %v2716 = vadd.f32 %v2714, %v2715
      %2717 = vadd.xlane.f32.xlu0 %v2716
      %v2718 = vpop.xlane.xlu0 %2717
      %v2719 = vadd.f32 %v2488, %v2489
      %v2720 = vadd.f32 %v2719, %v2490
      %v2721 = vadd.f32 %v2720, %v2491
      %v2722 = vadd.f32 %v2721, %v2492
      %v2723 = vadd.f32 %v2722, %v2493
      %v2724 = vsel %vm2696, %v2494, 0.0
      %v2725 = vadd.f32 %v2723, %v2724
      %2726 = vadd.xlane.f32.xlu0 %v2725
      %v2727 = vpop.xlane.xlu0 %2726
      %v2728 = vadd.f32 %v2495, %v2496
      %v2729 = vadd.f32 %v2728, %v2497
      %v2730 = vadd.f32 %v2729, %v2498
      %v2731 = vadd.f32 %v2730, %v2499
      %v2732 = vadd.f32 %v2731, %v2500
      %v2733 = vsel %vm2696, %v2501, 0.0
      %v2734 = vadd.f32 %v2732, %v2733
      %2735 = vadd.xlane.f32.xlu0 %v2734
      %v2736 = vpop.xlane.xlu0 %2735
      %v2737 = vadd.f32 %v2502, %v2503
      %v2738 = vadd.f32 %v2737, %v2504
      %v2739 = vadd.f32 %v2738, %v2505
      %v2740 = vadd.f32 %v2739, %v2506
      %v2741 = vadd.f32 %v2740, %v2507
      %v2742 = vsel %vm2696, %v2508, 0.0
      %v2743 = vadd.f32 %v2741, %v2742
      %2744 = vadd.xlane.f32.xlu0 %v2743
      %v2745 = vpop.xlane.xlu0 %2744
      %v2746 = vadd.f32 %v2509, %v2510
      %v2747 = vadd.f32 %v2746, %v2511
      %v2748 = vadd.f32 %v2747, %v2512
      %v2749 = vadd.f32 %v2748, %v2513
      %v2750 = vadd.f32 %v2749, %v2514
      %v2751 = vsel %vm2696, %v2515, 0.0
      %v2752 = vadd.f32 %v2750, %v2751
      %2753 = vadd.xlane.f32.xlu0 %v2752
      %v2754 = vpop.xlane.xlu0 %2753
      %v2755 = vadd.f32 %v2516, %v2517
      %v2756 = vadd.f32 %v2755, %v2518
      %v2757 = vadd.f32 %v2756, %v2519
      %v2758 = vadd.f32 %v2757, %v2520
      %v2759 = vadd.f32 %v2758, %v2521
      %v2760 = vsel %vm2696, %v2522, 0.0
      %v2761 = vadd.f32 %v2759, %v2760
      %2762 = vadd.xlane.f32.xlu0 %v2761
      %v2763 = vpop.xlane.xlu0 %2762
      %v2764 = vadd.f32 %v2523, %v2524
      %v2765 = vadd.f32 %v2764, %v2525
      %v2766 = vadd.f32 %v2765, %v2526
      %v2767 = vadd.f32 %v2766, %v2527
      %v2768 = vadd.f32 %v2767, %v2528
      %v2769 = vsel %vm2696, %v2529, 0.0
      %v2770 = vadd.f32 %v2768, %v2769
      %2771 = vadd.xlane.f32.xlu0 %v2770
      %v2772 = vpop.xlane.xlu0 %2771
      %v2773 = vadd.f32 %v2530, %v2531
      %v2774 = vadd.f32 %v2773, %v2532
      %v2775 = vadd.f32 %v2774, %v2533
      %v2776 = vadd.f32 %v2775, %v2534
      %v2777 = vadd.f32 %v2776, %v2535
      %v2778 = vsel %vm2696, %v2536, 0.0
      %v2779 = vadd.f32 %v2777, %v2778
      %2780 = vadd.xlane.f32.xlu0 %v2779
      %v2781 = vpop.xlane.xlu0 %2780
      %v2782 = vadd.f32 %v2537, %v2538
      %v2783 = vadd.f32 %v2782, %v2539
      %v2784 = vadd.f32 %v2783, %v2540
      %v2785 = vadd.f32 %v2784, %v2541
      %v2786 = vadd.f32 %v2785, %v2542
      %v2787 = vsel %vm2696, %v2543, 0.0
      %v2788 = vadd.f32 %v2786, %v2787
      %2789 = vadd.xlane.f32.xlu0 %v2788
      %v2790 = vpop.xlane.xlu0 %2789
      %v2791 = vadd.f32 %v2544, %v2545
      %v2792 = vadd.f32 %v2791, %v2546
      %v2793 = vadd.f32 %v2792, %v2547
      %v2794 = vadd.f32 %v2793, %v2548
      %v2795 = vadd.f32 %v2794, %v2549
      %v2796 = vsel %vm2696, %v2550, 0.0
      %v2797 = vadd.f32 %v2795, %v2796
      %2798 = vadd.xlane.f32.xlu0 %v2797
      %v2799 = vpop.xlane.xlu0 %2798
      %v2800 = vadd.f32 %v2551, %v2552
      %v2801 = vadd.f32 %v2800, %v2553
      %v2802 = vadd.f32 %v2801, %v2554
      %v2803 = vadd.f32 %v2802, %v2555
      %v2804 = vadd.f32 %v2803, %v2556
      %v2805 = vsel %vm2696, %v2557, 0.0
      %v2806 = vadd.f32 %v2804, %v2805
      %2807 = vadd.xlane.f32.xlu0 %v2806
      %v2808 = vpop.xlane.xlu0 %2807
      %v2809 = vadd.f32 %v2558, %v2559
      %v2810 = vadd.f32 %v2809, %v2560
      %v2811 = vadd.f32 %v2810, %v2561
      %v2812 = vadd.f32 %v2811, %v2562
      %v2813 = vadd.f32 %v2812, %v2563
      %v2814 = vsel %vm2696, %v2564, 0.0
      %v2815 = vadd.f32 %v2813, %v2814
      %2816 = vadd.xlane.f32.xlu0 %v2815
      %v2817 = vpop.xlane.xlu0 %2816
      %v2818 = vadd.f32 %v2565, %v2566
      %v2819 = vadd.f32 %v2818, %v2567
      %v2820 = vadd.f32 %v2819, %v2568
      %v2821 = vadd.f32 %v2820, %v2569
      %v2822 = vadd.f32 %v2821, %v2570
      %v2823 = vsel %vm2696, %v2571, 0.0
      %v2824 = vadd.f32 %v2822, %v2823
      %2825 = vadd.xlane.f32.xlu0 %v2824
      %v2826 = vpop.xlane.xlu0 %2825
      %v2827 = vadd.f32 %v2572, %v2573
      %v2828 = vadd.f32 %v2827, %v2574
      %v2829 = vadd.f32 %v2828, %v2575
      %v2830 = vadd.f32 %v2829, %v2576
      %v2831 = vadd.f32 %v2830, %v2577
      %v2832 = vsel %vm2696, %v2578, 0.0
      %v2833 = vadd.f32 %v2831, %v2832
      %2834 = vadd.xlane.f32.xlu0 %v2833
      %v2835 = vpop.xlane.xlu0 %2834
      %v2836 = vadd.f32 %v2579, %v2580
      %v2837 = vadd.f32 %v2836, %v2581
      %v2838 = vadd.f32 %v2837, %v2582
      %v2839 = vadd.f32 %v2838, %v2583
      %v2840 = vadd.f32 %v2839, %v2584
      %v2841 = vsel %vm2696, %v2585, 0.0
      %v2842 = vadd.f32 %v2840, %v2841
      %2843 = vadd.xlane.f32.xlu0 %v2842
      %v2844 = vpop.xlane.xlu0 %2843
      %v2845 = vadd.f32 %v2586, %v2587
      %v2846 = vadd.f32 %v2845, %v2588
      %v2847 = vadd.f32 %v2846, %v2589
      %v2848 = vadd.f32 %v2847, %v2590
      %v2849 = vadd.f32 %v2848, %v2591
      %v2850 = vsel %vm2696, %v2592, 0.0
      %v2851 = vadd.f32 %v2849, %v2850
      %2852 = vadd.xlane.f32.xlu0 %v2851
      %v2853 = vpop.xlane.xlu0 %2852
      %v2854 = vadd.f32 %v2593, %v2594
      %v2855 = vadd.f32 %v2854, %v2595
      %v2856 = vadd.f32 %v2855, %v2596
      %v2857 = vadd.f32 %v2856, %v2597
      %v2858 = vadd.f32 %v2857, %v2598
      %v2859 = vsel %vm2696, %v2599, 0.0
      %v2860 = vadd.f32 %v2858, %v2859
      %2861 = vadd.xlane.f32.xlu0 %v2860
      %v2862 = vpop.xlane.xlu0 %2861
      %v2863 = vadd.f32 %v2600, %v2601
      %v2864 = vadd.f32 %v2863, %v2602
      %v2865 = vadd.f32 %v2864, %v2603
      %v2866 = vadd.f32 %v2865, %v2604
      %v2867 = vadd.f32 %v2866, %v2605
      %v2868 = vsel %vm2696, %v2606, 0.0
      %v2869 = vadd.f32 %v2867, %v2868
      %2870 = vadd.xlane.f32.xlu0 %v2869
      %v2871 = vpop.xlane.xlu0 %2870
      %v2872 = vadd.f32 %v2607, %v2608
      %v2873 = vadd.f32 %v2872, %v2609
      %v2874 = vadd.f32 %v2873, %v2610
      %v2875 = vadd.f32 %v2874, %v2611
      %v2876 = vadd.f32 %v2875, %v2612
      %v2877 = vsel %vm2696, %v2613, 0.0
      %v2878 = vadd.f32 %v2876, %v2877
      %2879 = vadd.xlane.f32.xlu0 %v2878
      %v2880 = vpop.xlane.xlu0 %2879
      %v2881 = vadd.f32 %v2614, %v2615
      %v2882 = vadd.f32 %v2881, %v2616
      %v2883 = vadd.f32 %v2882, %v2617
      %v2884 = vadd.f32 %v2883, %v2618
      %v2885 = vadd.f32 %v2884, %v2619
      %v2886 = vsel %vm2696, %v2620, 0.0
      %v2887 = vadd.f32 %v2885, %v2886
      %2888 = vadd.xlane.f32.xlu0 %v2887
      %v2889 = vpop.xlane.xlu0 %2888
      %v2890 = vadd.f32 %v2621, %v2622
      %v2891 = vadd.f32 %v2890, %v2623
      %v2892 = vadd.f32 %v2891, %v2624
      %v2893 = vadd.f32 %v2892, %v2625
      %v2894 = vadd.f32 %v2893, %v2626
      %v2895 = vsel %vm2696, %v2627, 0.0
      %v2896 = vadd.f32 %v2894, %v2895
      %2897 = vadd.xlane.f32.xlu0 %v2896
      %v2898 = vpop.xlane.xlu0 %2897
      %v2899 = vadd.f32 %v2628, %v2629
      %v2900 = vadd.f32 %v2899, %v2630
      %v2901 = vadd.f32 %v2900, %v2631
      %v2902 = vadd.f32 %v2901, %v2632
      %v2903 = vadd.f32 %v2902, %v2633
      %v2904 = vsel %vm2696, %v2634, 0.0
      %v2905 = vadd.f32 %v2903, %v2904
      %2906 = vadd.xlane.f32.xlu0 %v2905
      %v2907 = vpop.xlane.xlu0 %2906
      %v2908 = vadd.f32 %v2635, %v2636
      %v2909 = vadd.f32 %v2908, %v2637
      %v2910 = vadd.f32 %v2909, %v2638
      %v2911 = vadd.f32 %v2910, %v2639
      %v2912 = vadd.f32 %v2911, %v2640
      %v2913 = vsel %vm2696, %v2641, 0.0
      %v2914 = vadd.f32 %v2912, %v2913
      %2915 = vadd.xlane.f32.xlu0 %v2914
      %v2916 = vpop.xlane.xlu0 %2915
      %v2917 = vadd.f32 %v2642, %v2643
      %v2918 = vadd.f32 %v2917, %v2644
      %v2919 = vadd.f32 %v2918, %v2645
      %v2920 = vadd.f32 %v2919, %v2646
      %v2921 = vadd.f32 %v2920, %v2647
      %v2922 = vsel %vm2696, %v2648, 0.0
      %v2923 = vadd.f32 %v2921, %v2922
      %2924 = vadd.xlane.f32.xlu0 %v2923
      %v2925 = vpop.xlane.xlu0 %2924
      %v2926 = vadd.f32 %v2649, %v2650
      %v2927 = vadd.f32 %v2926, %v2651
      %v2928 = vadd.f32 %v2927, %v2652
      %v2929 = vadd.f32 %v2928, %v2653
      %v2930 = vadd.f32 %v2929, %v2654
      %v2931 = vsel %vm2696, %v2655, 0.0
      %v2932 = vadd.f32 %v2930, %v2931
      %2933 = vadd.xlane.f32.xlu0 %v2932
      %v2934 = vpop.xlane.xlu0 %2933
      %v2935 = vadd.f32 %v2656, %v2657
      %v2936 = vadd.f32 %v2935, %v2658
      %v2937 = vadd.f32 %v2936, %v2659
      %v2938 = vadd.f32 %v2937, %v2660
      %v2939 = vadd.f32 %v2938, %v2661
      %v2940 = vsel %vm2696, %v2662, 0.0
      %v2941 = vadd.f32 %v2939, %v2940
      %2942 = vadd.xlane.f32.xlu0 %v2941
      %v2943 = vpop.xlane.xlu0 %2942
      %v2944 = vadd.f32 %v2663, %v2664
      %v2945 = vadd.f32 %v2944, %v2665
      %v2946 = vadd.f32 %v2945, %v2666
      %v2947 = vadd.f32 %v2946, %v2667
      %v2948 = vadd.f32 %v2947, %v2668
      %v2949 = vsel %vm2696, %v2669, 0.0
      %v2950 = vadd.f32 %v2948, %v2949
      %2951 = vadd.xlane.f32.xlu0 %v2950
      %v2952 = vpop.xlane.xlu0 %2951
      %v2953 = vadd.f32 %v2670, %v2671
      %v2954 = vadd.f32 %v2953, %v2672
      %v2955 = vadd.f32 %v2954, %v2673
      %v2956 = vadd.f32 %v2955, %v2674
      %v2957 = vadd.f32 %v2956, %v2675
      %v2958 = vsel %vm2696, %v2676, 0.0
      %v2959 = vadd.f32 %v2957, %v2958
      %2960 = vadd.xlane.f32.xlu0 %v2959
      %v2961 = vpop.xlane.xlu0 %2960
      %v2962 = vadd.f32 %v2677, %v2678
      %v2963 = vadd.f32 %v2962, %v2679
      %v2964 = vadd.f32 %v2963, %v2680
      %v2965 = vadd.f32 %v2964, %v2681
      %v2966 = vadd.f32 %v2965, %v2682
      %v2967 = vsel %vm2696, %v2683, 0.0
      %v2968 = vadd.f32 %v2966, %v2967
      %2969 = vadd.xlane.f32.xlu0 %v2968
      %v2970 = vpop.xlane.xlu0 %2969
      %v2971 = vadd.f32 %v2684, %v2685
      %v2972 = vadd.f32 %v2971, %v2686
      %v2973 = vadd.f32 %v2972, %v2687
      %v2974 = vadd.f32 %v2973, %v2688
      %v2975 = vadd.f32 %v2974, %v2689
      %v2976 = vsel %vm2696, %v2690, 0.0
      %v2977 = vadd.f32 %v2975, %v2976
      %2978 = vadd.xlane.f32.xlu0 %v2977
      %v2979 = vpop.xlane.xlu0 %2978
      %v2980 = vld [vmem:[#allocation2] sm:$0x1]
      %v2982 = vlaneseq
      %v2983 = vshrl.u32 %v2982, 7
      %v2984 = vsub.s32 0, %v2983
      %v2985 = vrot.slane %v2980, %v2984
      %v2987 = vadd.f32 %v2700, %v2985
      %v2988 = vadd.f32 %v2709, %v2985
      %v2989 = vadd.f32 %v2718, %v2985
      %v2990 = vadd.f32 %v2727, %v2985
      %v2991 = vadd.f32 %v2736, %v2985
      %v2992 = vadd.f32 %v2745, %v2985
      %v2993 = vadd.f32 %v2754, %v2985
      %v2994 = vadd.f32 %v2763, %v2985
      %v2995 = vadd.f32 %v2772, %v2985
      %v2996 = vadd.f32 %v2781, %v2985
      %v2997 = vadd.f32 %v2790, %v2985
      %v2998 = vadd.f32 %v2799, %v2985
      %v2999 = vadd.f32 %v2808, %v2985
      %v3000 = vadd.f32 %v2817, %v2985
      %v3001 = vadd.f32 %v2826, %v2985
      %v3002 = vadd.f32 %v2835, %v2985
      %v3003 = vadd.f32 %v2844, %v2985
      %v3004 = vadd.f32 %v2853, %v2985
      %v3005 = vadd.f32 %v2862, %v2985
      %v3006 = vadd.f32 %v2871, %v2985
      %v3007 = vadd.f32 %v2880, %v2985
      %v3008 = vadd.f32 %v2889, %v2985
      %v3009 = vadd.f32 %v2898, %v2985
      %v3010 = vadd.f32 %v2907, %v2985
      %v3011 = vadd.f32 %v2916, %v2985
      %v3012 = vadd.f32 %v2925, %v2985
      %v3013 = vadd.f32 %v2934, %v2985
      %v3014 = vadd.f32 %v2943, %v2985
      %v3015 = vadd.f32 %v2952, %v2985
      %v3016 = vadd.f32 %v2961, %v2985
      %v3017 = vadd.f32 %v2970, %v2985
      %v3018 = vadd.f32 %v2979, %v2985
      %vm3019 = vcmask 7168
      %3020 = vst.msk [vmem:[%s282] sm:$0xff] %vm3019, %v2987
      %3021 = vst.msk [vmem:[%s282 + $0x8] sm:$0xff] %vm3019, %v2988
      %3022 = vst.msk [vmem:[%s282 + $0x10] sm:$0xff] %vm3019, %v2989
      %3023 = vst.msk [vmem:[%s282 + $0x18] sm:$0xff] %vm3019, %v2990
      %3024 = vst.msk [vmem:[%s282 + $0x20] sm:$0xff] %vm3019, %v2991
      %3025 = vst.msk [vmem:[%s282 + $0x28] sm:$0xff] %vm3019, %v2992
      %3026 = vst.msk [vmem:[%s282 + $0x30] sm:$0xff] %vm3019, %v2993
      %3027 = vst.msk [vmem:[%s282 + $0x38] sm:$0xff] %vm3019, %v2994
      %3028 = vst.msk [vmem:[%s282 + $0x40] sm:$0xff] %vm3019, %v2995
      %3029 = vst.msk [vmem:[%s282 + $0x48] sm:$0xff] %vm3019, %v2996
      %3030 = vst.msk [vmem:[%s282 + $0x50] sm:$0xff] %vm3019, %v2997
      %3031 = vst.msk [vmem:[%s282 + $0x58] sm:$0xff] %vm3019, %v2998
      %3032 = vst.msk [vmem:[%s282 + $0x60] sm:$0xff] %vm3019, %v2999
      %3033 = vst.msk [vmem:[%s282 + $0x68] sm:$0xff] %vm3019, %v3000
      %3034 = vst.msk [vmem:[%s282 + $0x70] sm:$0xff] %vm3019, %v3001
      %3035 = vst.msk [vmem:[%s282 + $0x78] sm:$0xff] %vm3019, %v3002
      %3036 = vst.msk [vmem:[%s282 + $0x80] sm:$0xff] %vm3019, %v3003
      %3037 = vst.msk [vmem:[%s282 + $0x88] sm:$0xff] %vm3019, %v3004
      %3038 = vst.msk [vmem:[%s282 + $0x90] sm:$0xff] %vm3019, %v3005
      %3039 = vst.msk [vmem:[%s282 + $0x98] sm:$0xff] %vm3019, %v3006
      %3040 = vst.msk [vmem:[%s282 + $0xa0] sm:$0xff] %vm3019, %v3007
      %3041 = vst.msk [vmem:[%s282 + $0xa8] sm:$0xff] %vm3019, %v3008
      %3042 = vst.msk [vmem:[%s282 + $0xb0] sm:$0xff] %vm3019, %v3009
      %3043 = vst.msk [vmem:[%s282 + $0xb8] sm:$0xff] %vm3019, %v3010
      %3044 = vst.msk [vmem:[%s282 + $0xc0] sm:$0xff] %vm3019, %v3011
      %3045 = vst.msk [vmem:[%s282 + $0xc8] sm:$0xff] %vm3019, %v3012
      %3046 = vst.msk [vmem:[%s282 + $0xd0] sm:$0xff] %vm3019, %v3013
      %3047 = vst.msk [vmem:[%s282 + $0xd8] sm:$0xff] %vm3019, %v3014
      %3048 = vst.msk [vmem:[%s282 + $0xe0] sm:$0xff] %vm3019, %v3015
      %3049 = vst.msk [vmem:[%s282 + $0xe8] sm:$0xff] %vm3019, %v3016
      %3050 = vst.msk [vmem:[%s282 + $0xf0] sm:$0xff] %vm3019, %v3017
      %3051 = vst.msk [vmem:[%s282 + $0xf8] sm:$0xff] %vm3019, %v3018
      %s3052 = smul.u32 32, %s20
      %p3053 = scmp.lt.s32.totalorder %s3052, 63
      %s3054 = scalar_select %p3053, %s3052, 63
      %s3055 = smul.addr %s3054, 8
      %s3056 = scalar_lea.vmem %s7, %s3055
      // Predicated region
      $region49: #{mlp_forward.1} parent=47 // pred_check
        %p3057 = pneg %p190
      $region50: #{mlp_forward.1} parent=47 // pred_check_branch
        %3059 = sbr.rel (%p3057) target = $region52
      $region51: #{mlp_forward.1} parent=47 // pred_region
        %s3060 = smul.u32 32, %s20
      $region52: #{mlp_forward.1} parent=47 // pred_fallthru
        _
    $region48: #{mlp_forward.1} parent=5 // pred_fallthru
      _
    %p3061 = scmp.le.s32.totalorder 2, %s15
    // Predicated region
    $region53: #{mlp_forward.1} parent=5 // pred_check
      %p3062 = pneg %p3061
    $region54: #{mlp_forward.1} parent=5 // pred_check_branch
      %3064 = sbr.rel (%p3062) target = $region56
    $region55: #{mlp_forward.1} parent=5 // pred_region
      %s3065 = ssub.s32 %s15, 2
      // Predicated region
      $region57: #{mlp_forward.1} parent=55 // pred_check
        %p3066 = pneg %p196
      $region58: #{mlp_forward.1} parent=55 // pred_check_branch
        %3068 = sbr.rel (%p3066) target = $region60
      $region59: #{mlp_forward.1} parent=55 // pred_region
        %s3069 = smul.u32 32, %s21
        %p3070 = scmp.lt.s32.totalorder %s3069, 63
        %s3071 = scalar_select %p3070, %s3069, 63
        %s3072 = smul.addr %s3071, 8
        %s3073 = scalar_lea.vmem %s7, %s3072
      $region60: #{mlp_forward.1} parent=55 // pred_fallthru
        _
    $region56: #{mlp_forward.1} parent=5 // pred_fallthru
      _
  $region6: #{mlp_forward.1} parent=0 // loop_footer
    %s19 = sadd.s32 1, %s15
  $region7: #{mlp_forward.1} parent=0 // loop_footer_branch
    %14 = sbr.rel target = $region3
  $region8: #{mlp_forward.1} parent=0 // loop_exit
    _

</llo_original>
